<compile_context>
chip_gen: v5e
topology: v5e:2x2
jax: 0.10.0
libtpu: 0.0.40
codegen_flags: <defaults>
</compile_context>

<pallas_src>
import functools

import jax
import jax.numpy as jnp
from jax import lax
from jax.experimental import pallas as pl
from jax.experimental.pallas import tpu as pltpu

TRAINING_RATE = 0.005
THRESHOLD = 0.0
FPAD = 128          # lane-padded feature width shared by every layer
NUM_LAYERS = 3


# ----------------------------- Pallas kernel ------------------------------ #
def _make_ffgnn_kernel(n_nodes, tm, tk):
    """Fused 3-layer FFGNN kernel, grid = (layer, row_tile, k_tile)."""

    def kernel(x_ref, a_ref, w_ref, b_ref, dw_ref, small_ref, z_scr, acc_scr):
        l = pl.program_id(0)
        i = pl.program_id(1)
        k = pl.program_id(2)
        nk = pl.num_programs(2)

        # Activations ping-pong between the two halves of z_scr ([2N, 128] f32).
        prev_base = (l % 2) * n_nodes
        new_base = ((l + 1) % 2) * n_nodes

        # Layer-0 bootstrap: stream x's k-tile into the layer-0 activation slot.
        @pl.when((l == 0) & (i == 0))
        def _():
            z_scr[pl.ds(pl.multiple_of(k * tk, 8), tk), :] = x_ref[...]

        # Fresh row tile: reset the A@z accumulator.
        @pl.when(k == 0)
        def _():
            acc_scr[...] = jnp.zeros_like(acc_scr)

        # Fresh layer: reset the per-layer resident output accumulators.
        @pl.when((i == 0) & (k == 0))
        def _():
            dw_ref[...] = jnp.zeros_like(dw_ref)
            small_ref[...] = jnp.zeros_like(small_ref)

        # acc[i] += A[i, k] @ z_prev[k]   (bf16 MXU operands, f32 accumulate).
        zk = z_scr[pl.ds(pl.multiple_of(prev_base + k * tk, 8), tk), :]
        acc_scr[...] += jnp.dot(a_ref[...], zk.astype(jnp.bfloat16),
                                preferred_element_type=jnp.float32)

        @pl.when(k == nk - 1)
        def _():
            # GCNConv(x) row tile: relu((A @ z_prev)[i] @ W + b); elementwise in f32.
            az = acc_scr[...]
            z = jnp.dot(az.astype(jnp.bfloat16), w_ref[0],
                        preferred_element_type=jnp.float32)
            z = jnp.maximum(z + b_ref[0, 0:1, :], 0.0)
            z_scr[pl.ds(pl.multiple_of(new_base + i * tm, 8), tm), :] = z

            # activation_gradient(z) = 2*|z|; weighted_deriv = (2*|z|)^2 = 4*z^2 (z>=0).
            wd = 4.0 * z * z
            x_prev = z_scr[pl.ds(pl.multiple_of(prev_base + i * tm, 8), tm), :]
            # dL_dW += x_prev.T @ wd: contract over axis 0 directly.
            # TODO(synk): confirm via pl.lower_as_mlir that this lowers to a
            # transposed-LHS vmatmul (no XLU transpose copy of x_prev per tile).
            dw_ref[0] += lax.dot_general(
                x_prev.astype(jnp.bfloat16), wd.astype(jnp.bfloat16),
                dimension_numbers=(((0,), (0,)), ((), ())),
                preferred_element_type=jnp.float32)
            # Packed small outputs: row 0 = dL_db, row 1 = sum(z^2) (lane-broadcast).
            small_ref[0, 0:1, :] += jnp.sum(wd, axis=0, keepdims=True)
            small_ref[0, 1:2, :] += jnp.full((1, FPAD), jnp.sum(z * z), jnp.float32)

    return kernel


def _pad2d(m, rows, cols, dtype=jnp.float32):
    out = jnp.zeros((rows, cols), dtype)
    return out.at[: m.shape[0], : m.shape[1]].set(m.astype(dtype))


def ffgnn_fused(x, a_hat, params, *, tm=128, tk=128):
    """Run all three FFGNN layers in one tiled Pallas call.

    Returns [(dL_dW, dL_db, goodness)] per layer at their TRUE (unpadded) shapes.
    """
    n = x.shape[0]
    tm = min(tm, n)
    tk = min(tk, n)
    assert n % 8 == 0, "node count must be a multiple of 8 sublanes"
    assert n % tm == 0 and n % tk == 0, "tile sizes must divide the node count"
    assert tm % 8 == 0
    assert tk == n or tk % 128 == 0, "A tile lane width must be 128-aligned or full"
    assert len(params) == NUM_LAYERS

    true_fins = [w.shape[0] for (w, _) in params]
    true_fouts = [w.shape[1] for (w, _) in params]
    assert max(max(true_fins), max(true_fouts)) <= FPAD

    xp = _pad2d(x, n, FPAD)                                    # f32 activations
    ap = a_hat.astype(jnp.bfloat16)                            # bf16 MXU operand
    wp = jnp.stack([_pad2d(w, FPAD, FPAD, jnp.bfloat16) for (w, _) in params])
    bp = jnp.stack([_pad2d(b.reshape(1, -1), 8, FPAD) for (_, b) in params])

    grid = (NUM_LAYERS, n // tm, n // tk)

    flops = NUM_LAYERS * (2 * n * n * FPAD + 4 * n * FPAD * FPAD)
    bytes_accessed = (NUM_LAYERS * n * n * 2                       # A per layer
                      + NUM_LAYERS * (n // tm) * n * FPAD * 4      # x refetch per (l,i)
                      + NUM_LAYERS * (2 * FPAD * FPAD + 8 * FPAD) * 4)

    # Explicit VMEM budget (v7x: 64 MiB physical / 32 MiB default scoped).
    vmem_bytes = (2 * n * FPAD * 4            # resident activation ping-pong
                  + tm * FPAD * 4             # A@z accumulator
                  + 2 * tm * tk * 2           # A tiles (double-buffered, bf16)
                  + 2 * tk * FPAD * 4         # x tiles (double-buffered)
                  + 2 * (FPAD * FPAD * 2 + 8 * FPAD * 4)       # W + b
                  + 2 * (FPAD * FPAD * 4 + 8 * FPAD * 4))      # dW + packed small
    vmem_limit = int(min(max(2 * vmem_bytes, 16 << 20), 64 << 20))

    dw_out, small_out = pl.pallas_call(
        _make_ffgnn_kernel(n, tm, tk),
        out_shape=(jax.ShapeDtypeStruct((NUM_LAYERS, FPAD, FPAD), jnp.float32),
                   jax.ShapeDtypeStruct((NUM_LAYERS, 8, FPAD), jnp.float32)),
        grid_spec=pltpu.PrefetchScalarGridSpec(
            num_scalar_prefetch=0,
            grid=grid,
            in_specs=[
                pl.BlockSpec((tk, FPAD), lambda l, i, k: (k, 0)),          # x (layer 0)
                pl.BlockSpec((tm, tk), lambda l, i, k: (i, k)),            # A_hat tile
                pl.BlockSpec((1, FPAD, FPAD), lambda l, i, k: (l, 0, 0)),  # W stack
                pl.BlockSpec((1, 8, FPAD), lambda l, i, k: (l, 0, 0)),     # b stack
            ],
            out_specs=[
                pl.BlockSpec((1, FPAD, FPAD), lambda l, i, k: (l, 0, 0)),  # dL_dW
                pl.BlockSpec((1, 8, FPAD), lambda l, i, k: (l, 0, 0)),     # db+goodness
            ],
            scratch_shapes=[
                pltpu.VMEM((2 * n, FPAD), jnp.float32),   # resident z (ping-pong)
                pltpu.VMEM((tm, FPAD), jnp.float32),      # A@z row-tile accumulator
            ]),
        compiler_params=pltpu.CompilerParams(
            # TODO(synk): row-tile axis could be 'parallel' on v7x's 2 TCs if dW/db
            # were accumulated per-core and reduced afterwards; layer & k axes are
            # true reductions/dependencies so they stay 'arbitrary'.
            # TODO(synk): for large sparse graphs, add a scalar-prefetched
            # block-nonzero mask over A and skip all-zero (i,k) tiles with pl.when.
            dimension_semantics=("arbitrary", "arbitrary", "arbitrary"),
            vmem_limit_bytes=vmem_limit),
        cost_estimate=pl.CostEstimate(flops=flops, transcendentals=0,
                                      bytes_accessed=bytes_accessed),
    )(xp, ap, wp, bp)

    results = []
    for li in range(NUM_LAYERS):
        fin, fout = true_fins[li], true_fouts[li]
        dw = dw_out[li, :fin, :fout]
        db = small_out[li, 0, :fout]
        goodness = small_out[li, 1, 0] / float(fout)
        results.append((dw, db, goodness))
    return results


# ------------------------------- JAX glue --------------------------------- #
def local_loss(goodness, positive):
    """Matches FFGNN.local_loss (threshold = 0); `positive` is a static bool."""
    t = THRESHOLD
    if positive:
        return jnp.where(goodness > 10.0 + t, 0.0,
               jnp.where(goodness < t - 10.0, t - goodness,
                         jnp.log(1.0 + jnp.exp(-goodness + t))))
    return jnp.where(goodness > 10.0 + t, t + goodness,
           jnp.where(goodness < t - 10.0, 0.0,
                     jnp.log(1.0 + jnp.exp(goodness + t))))


def gcn_norm_adj(edge_index, num_nodes):
    """Dense PyG-style GCN normalization: D^{-1/2} (A + I) D^{-1/2}."""
    src, dst = edge_index[0], edge_index[1]
    a = jnp.zeros((num_nodes, num_nodes), jnp.float32).at[dst, src].add(1.0)
    a = a + jnp.eye(num_nodes, dtype=jnp.float32)
    deg = jnp.sum(a, axis=1)
    d_inv_sqrt = jnp.where(deg > 0, 1.0 / jnp.sqrt(deg), 0.0)
    return d_inv_sqrt[:, None] * a * d_inv_sqrt[None, :]


@functools.partial(jax.jit, static_argnames=("positive",))
def ffgnn_forward(x, a_hat, params, *, positive):
    """FFGNN.forward(data, positive) -> aggregate_loss.

    Also returns conv1's (W, b) after the in-place 'greedy' updates the original
    performs as a side effect (they never influence the returned loss).
    """
    w1, b1 = params[0]
    # NOTE: the original also computes activation_normalizer(x) and
    # loss_derivative(goodness) but immediately overwrites both results; that
    # dead code is omitted here.
    per_layer = ffgnn_fused(x, a_hat, params)
    aggregate_loss = jnp.float32(0.0)
    for (dw, db, goodness) in per_layer:
        aggregate_loss = aggregate_loss + local_loss(goodness, positive)
        # Original always mutates conv1: weights -= lr * dL_dW.t(); bias -= lr * dL_db.
        if dw.shape == w1.shape and db.shape == b1.shape:
            w1 = w1 - TRAINING_RATE * dw
            b1 = b1 - TRAINING_RATE * db
        # TODO(synk): the layer-3 conv1 update is shape-inconsistent in the original
        # PyTorch code (broadcast error); skipped here — it never affects the loss.
    return aggregate_loss, (w1, b1)


# --------------------------------- main ------------------------------------ #
if __name__ == "__main__":
    key = jax.random.PRNGKey(0)
    N, F_IN, HIDDEN, N_CLASSES = 256, 16, 16, 2   # 256 nodes -> (3, 2, 2) grid
    k_x, k_w1, k_w2, k_w3 = jax.random.split(key, 4)

    # data.x : [N, num_node_features]
    x = jax.random.normal(k_x, (N, F_IN), jnp.float32)

    # deterministic undirected ring graph; data.edge_index : [2, 2N]
    src = jnp.arange(N, dtype=jnp.int32)
    dst = (src + 1) % N
    edge_index = jnp.stack([jnp.concatenate([src, dst]),
                            jnp.concatenate([dst, src])], axis=0)
    a_hat = gcn_norm_adj(edge_index, N)

    def glorot(k, fin, fout):
        lim = (6.0 / (fin + fout)) ** 0.5
        return jax.random.uniform(k, (fin, fout), jnp.float32, -lim, lim)

    # GCNConv params: weight stored as [F_in, F_out], bias zeros (PyG default).
    params = [
        (glorot(k_w1, F_IN, HIDDEN), jnp.zeros((HIDDEN,), jnp.float32)),
        (glorot(k_w2, HIDDEN, HIDDEN), jnp.zeros((HIDDEN,), jnp.float32)),
        (glorot(k_w3, HIDDEN, N_CLASSES), jnp.zeros((N_CLASSES,), jnp.float32)),
    ]

    loss, (w1_new, b1_new) = ffgnn_forward(x, a_hat, params, positive=True)
    jax.block_until_ready(loss)
    jax.block_until_ready(w1_new)
    jax.block_until_ready(b1_new)

    ok = bool(jnp.isfinite(loss)
              and jnp.all(jnp.isfinite(w1_new))
              and jnp.all(jnp.isfinite(b1_new)))
    if ok:
        print("KERNEL_OK")
    else:
        print("KERNEL_FAILED: non-finite outputs")
</pallas_src>

<mosaic_0001>
module attributes {stable_mosaic.version = 11 : i64} {
  func.func @kernel(%arg0: i32, %arg1: i32, %arg2: i32, %arg3: memref<128x128xf32, #tpu.memory_space<vmem>>, %arg4: memref<128x128xbf16, #tpu.memory_space<vmem>>, %arg5: memref<1x128x128xbf16, #tpu.memory_space<vmem>>, %arg6: memref<1x8x128xf32, #tpu.memory_space<vmem>>, %arg7: memref<1x128x128xf32, #tpu.memory_space<vmem>>, %arg8: memref<1x8x128xf32, #tpu.memory_space<vmem>>, %arg9: memref<512x128xf32, #tpu.memory_space<vmem>>, %arg10: memref<128x128xf32, #tpu.memory_space<vmem>>) attributes {dimension_semantics = [#tpu.dimension_semantics<arbitrary>, #tpu.dimension_semantics<arbitrary>, #tpu.dimension_semantics<arbitrary>], iteration_bounds = array<i64: 3, 2, 2>, scalar_prefetch = 0 : i64, scratch_operands = 2 : i64, tpu.core_type = #tpu.core_type<tc>, window_params = [{transform_indices = @transform_0, window_bounds = array<i64: 128, 128>}, {transform_indices = @transform_1, window_bounds = array<i64: 128, 128>}, {transform_indices = @transform_2, window_bounds = array<i64: 1, 128, 128>}, {transform_indices = @transform_3, window_bounds = array<i64: 1, 8, 128>}, {transform_indices = @transform_4, window_bounds = array<i64: 1, 128, 128>}, {transform_indices = @transform_5, window_bounds = array<i64: 1, 8, 128>}]} {
    %c2_i32 = arith.constant 2 : i32
    %c0_i32 = arith.constant 0 : i32
    %0 = arith.cmpi eq, %c2_i32, %c0_i32 : i32
    %c1_i32 = arith.constant 1 : i32
    %1 = arith.select %0, %c1_i32, %c2_i32 : i32
    %2 = arith.remsi %arg0, %1 : i32
    %c0_i32_0 = arith.constant 0 : i32
    %3 = arith.cmpi ne, %2, %c0_i32_0 : i32
    %c0_i32_1 = arith.constant 0 : i32
    %4 = arith.cmpi slt, %2, %c0_i32_1 : i32
    %c0_i32_2 = arith.constant 0 : i32
    %5 = arith.cmpi slt, %1, %c0_i32_2 : i32
    %6 = arith.xori %4, %5 : i1
    %7 = arith.andi %6, %3 : i1
    %8 = arith.addi %2, %1 : i32
    %9 = arith.select %7, %8, %2 : i32
    %c256_i32 = arith.constant 256 : i32
    %10 = arith.muli %9, %c256_i32 : i32
    %c1_i32_3 = arith.constant 1 : i32
    %11 = arith.addi %arg0, %c1_i32_3 : i32
    %c2_i32_4 = arith.constant 2 : i32
    %c0_i32_5 = arith.constant 0 : i32
    %12 = arith.cmpi eq, %c2_i32_4, %c0_i32_5 : i32
    %c1_i32_6 = arith.constant 1 : i32
    %13 = arith.select %12, %c1_i32_6, %c2_i32_4 : i32
    %14 = arith.remsi %11, %13 : i32
    %c0_i32_7 = arith.constant 0 : i32
    %15 = arith.cmpi ne, %14, %c0_i32_7 : i32
    %c0_i32_8 = arith.constant 0 : i32
    %16 = arith.cmpi slt, %14, %c0_i32_8 : i32
    %c0_i32_9 = arith.constant 0 : i32
    %17 = arith.cmpi slt, %13, %c0_i32_9 : i32
    %18 = arith.xori %16, %17 : i1
    %19 = arith.andi %18, %15 : i1
    %20 = arith.addi %14, %13 : i32
    %21 = arith.select %19, %20, %14 : i32
    %c256_i32_10 = arith.constant 256 : i32
    %22 = arith.muli %21, %c256_i32_10 : i32
    %c0_i32_11 = arith.constant 0 : i32
    %23 = arith.cmpi eq, %arg0, %c0_i32_11 : i32
    %c0_i32_12 = arith.constant 0 : i32
    %24 = arith.cmpi eq, %arg1, %c0_i32_12 : i32
    %25 = arith.andi %23, %24 : i1
    %26 = arith.extui %25 : i1 to i32
    %c0_i32_13 = arith.constant 0 : i32
    %27 = arith.cmpi ne, %26, %c0_i32_13 : i32
    scf.if %27 {
      %c0_27 = arith.constant 0 : index
      %c0_28 = arith.constant 0 : index
      %50 = vector.load %arg3[%c0_27, %c0_28] : memref<128x128xf32, #tpu.memory_space<vmem>>, vector<128x128xf32>
      %c128_i32_29 = arith.constant 128 : i32
      %51 = arith.muli %arg2, %c128_i32_29 : i32
      %52 = tpu.assume_multiple %51, 8 : i32
      %53 = arith.index_cast %52 : i32 to index
      %c0_30 = arith.constant 0 : index
      %54 = vector.load %arg9[%53, %c0_30] : memref<512x128xf32, #tpu.memory_space<vmem>>, vector<128x128xf32>
      tpu.vector_store %arg9[%53, %c0_30], %50 {strides = array<i32>} : memref<512x128xf32, #tpu.memory_space<vmem>>, vector<128x128xf32>,
    } else {
    }
    %c0_i32_14 = arith.constant 0 : i32
    %28 = arith.cmpi eq, %arg2, %c0_i32_14 : i32
    %29 = arith.extui %28 : i1 to i32
    %c0_i32_15 = arith.constant 0 : i32
    %30 = arith.cmpi ne, %29, %c0_i32_15 : i32
    scf.if %30 {
      %cst_27 = arith.constant 0.000000e+00 : f32
      %50 = vector.broadcast %cst_27 : f32 to vector<128x128xf32>
      %c0_28 = arith.constant 0 : index
      %c0_29 = arith.constant 0 : index
      %51 = vector.load %arg10[%c0_28, %c0_29] : memref<128x128xf32, #tpu.memory_space<vmem>>, vector<128x128xf32>
      tpu.vector_store %arg10[%c0_28, %c0_29], %50 {strides = array<i32>} : memref<128x128xf32, #tpu.memory_space<vmem>>, vector<128x128xf32>,
    } else {
    }
    %c0_i32_16 = arith.constant 0 : i32
    %31 = arith.cmpi eq, %arg1, %c0_i32_16 : i32
    %c0_i32_17 = arith.constant 0 : i32
    %32 = arith.cmpi eq, %arg2, %c0_i32_17 : i32
    %33 = arith.andi %31, %32 : i1
    %34 = arith.extui %33 : i1 to i32
    %c0_i32_18 = arith.constant 0 : i32
    %35 = arith.cmpi ne, %34, %c0_i32_18 : i32
    scf.if %35 {
      %cst_27 = arith.constant 0.000000e+00 : f32
      %50 = vector.broadcast %cst_27 : f32 to vector<1x128x128xf32>
      %c0_28 = arith.constant 0 : index
      %c0_29 = arith.constant 0 : index
      %c0_30 = arith.constant 0 : index
      %51 = vector.load %arg7[%c0_28, %c0_29, %c0_30] : memref<1x128x128xf32, #tpu.memory_space<vmem>>, vector<1x128x128xf32>
      tpu.vector_store %arg7[%c0_28, %c0_29, %c0_30], %50 {strides = array<i32>} : memref<1x128x128xf32, #tpu.memory_space<vmem>>, vector<1x128x128xf32>,
      %cst_31 = arith.constant 0.000000e+00 : f32
      %52 = vector.broadcast %cst_31 : f32 to vector<1x8x128xf32>
      %c0_32 = arith.constant 0 : index
      %c0_33 = arith.constant 0 : index
      %c0_34 = arith.constant 0 : index
      %53 = vector.load %arg8[%c0_32, %c0_33, %c0_34] : memref<1x8x128xf32, #tpu.memory_space<vmem>>, vector<1x8x128xf32>
      tpu.vector_store %arg8[%c0_32, %c0_33, %c0_34], %52 {strides = array<i32>} : memref<1x8x128xf32, #tpu.memory_space<vmem>>, vector<1x8x128xf32>,
    } else {
    }
    %c128_i32 = arith.constant 128 : i32
    %36 = arith.muli %arg2, %c128_i32 : i32
    %37 = arith.addi %10, %36 : i32
    %38 = tpu.assume_multiple %37, 8 : i32
    %39 = arith.index_cast %38 : i32 to index
    %c0 = arith.constant 0 : index
    %40 = vector.load %arg9[%39, %c0] : memref<512x128xf32, #tpu.memory_space<vmem>>, vector<128x128xf32>
    %c0_19 = arith.constant 0 : index
    %c0_20 = arith.constant 0 : index
    %41 = vector.load %arg10[%c0_19, %c0_20] : memref<128x128xf32, #tpu.memory_space<vmem>>, vector<128x128xf32>
    %c0_21 = arith.constant 0 : index
    %c0_22 = arith.constant 0 : index
    %42 = vector.load %arg4[%c0_21, %c0_22] : memref<128x128xbf16, #tpu.memory_space<vmem>>, vector<128x128xbf16>
    %43 = arith.truncf %40 : vector<128x128xf32> to vector<128x128xbf16>
    %cst = arith.constant dense<0.000000e+00> : vector<128x128xf32>
    %44 = tpu.matmul %42, %43, %cst {dimension_numbers = #tpu.dot_dimension_numbers<[1], [0], [0], [1], [0, 0, 1, 1], [], []>} : vector<128x128xbf16>, vector<128x128xbf16>, vector<128x128xf32> -> vector<128x128xf32>
    %45 = arith.addf %41, %44 : vector<128x128xf32>
    %c0_23 = arith.constant 0 : index
    %c0_24 = arith.constant 0 : index
    %46 = vector.load %arg10[%c0_23, %c0_24] : memref<128x128xf32, #tpu.memory_space<vmem>>, vector<128x128xf32>
    tpu.vector_store %arg10[%c0_23, %c0_24], %45 {strides = array<i32>} : memref<128x128xf32, #tpu.memory_space<vmem>>, vector<128x128xf32>,
    %c1_i32_25 = arith.constant 1 : i32
    %47 = arith.cmpi eq, %arg2, %c1_i32_25 : i32
    %48 = arith.extui %47 : i1 to i32
    %c0_i32_26 = arith.constant 0 : i32
    %49 = arith.cmpi ne, %48, %c0_i32_26 : i32
    scf.if %49 {
      %c0_27 = arith.constant 0 : index
      %c0_28 = arith.constant 0 : index
      %50 = vector.load %arg10[%c0_27, %c0_28] : memref<128x128xf32, #tpu.memory_space<vmem>>, vector<128x128xf32>
      %51 = arith.truncf %50 : vector<128x128xf32> to vector<128x128xbf16>
      %c0_29 = arith.constant 0 : index
      %c0_30 = arith.constant 0 : index
      %c0_31 = arith.constant 0 : index
      %52 = vector.load %arg5[%c0_29, %c0_30, %c0_31] : memref<1x128x128xbf16, #tpu.memory_space<vmem>>, vector<1x128x128xbf16>
      %53 = vector.shape_cast %52 : vector<1x128x128xbf16> to vector<128x128xbf16>
      %cst_32 = arith.constant dense<0.000000e+00> : vector<128x128xf32>
      %54 = tpu.matmul %51, %53, %cst_32 {dimension_numbers = #tpu.dot_dimension_numbers<[1], [0], [0], [1], [0, 0, 1, 1], [], []>} : vector<128x128xbf16>, vector<128x128xbf16>, vector<128x128xf32> -> vector<128x128xf32>
      %c0_33 = arith.constant 0 : index
      %c0_34 = arith.constant 0 : index
      %c0_35 = arith.constant 0 : index
      %55 = vector.load %arg6[%c0_33, %c0_34, %c0_35] : memref<1x8x128xf32, #tpu.memory_space<vmem>>, vector<1x1x128xf32>
      %56 = vector.shape_cast %55 : vector<1x1x128xf32> to vector<1x128xf32>
      %57 = vector.broadcast %56 : vector<1x128xf32> to vector<128x128xf32>
      %58 = arith.addf %54, %57 : vector<128x128xf32>
      %cst_36 = arith.constant 0.000000e+00 : f32
      %59 = vector.broadcast %cst_36 : f32 to vector<128x128xf32>
      %60 = arith.maximumf %58, %59 : vector<128x128xf32>
      %c128_i32_37 = arith.constant 128 : i32
      %61 = arith.muli %arg1, %c128_i32_37 : i32
      %62 = arith.addi %22, %61 : i32
      %63 = tpu.assume_multiple %62, 8 : i32
      %64 = arith.index_cast %63 : i32 to index
      %c0_38 = arith.constant 0 : index
      %65 = vector.load %arg9[%64, %c0_38] : memref<512x128xf32, #tpu.memory_space<vmem>>, vector<128x128xf32>
      tpu.vector_store %arg9[%64, %c0_38], %60 {strides = array<i32>} : memref<512x128xf32, #tpu.memory_space<vmem>>, vector<128x128xf32>,
      %cst_39 = arith.constant 4.000000e+00 : f32
      %66 = vector.broadcast %cst_39 : f32 to vector<128x128xf32>
      %67 = arith.mulf %66, %60 : vector<128x128xf32>
      %68 = arith.mulf %67, %60 : vector<128x128xf32>
      %c128_i32_40 = arith.constant 128 : i32
      %69 = arith.muli %arg1, %c128_i32_40 : i32
      %70 = arith.addi %10, %69 : i32
      %71 = tpu.assume_multiple %70, 8 : i32
      %72 = arith.index_cast %71 : i32 to index
      %c0_41 = arith.constant 0 : index
      %73 = vector.load %arg9[%72, %c0_41] : memref<512x128xf32, #tpu.memory_space<vmem>>, vector<128x128xf32>
      %c0_42 = arith.constant 0 : index
      %c0_43 = arith.constant 0 : index
      %c0_44 = arith.constant 0 : index
      %74 = vector.load %arg7[%c0_42, %c0_43, %c0_44] : memref<1x128x128xf32, #tpu.memory_space<vmem>>, vector<1x128x128xf32>
      %75 = vector.shape_cast %74 : vector<1x128x128xf32> to vector<128x128xf32>
      %76 = arith.truncf %73 : vector<128x128xf32> to vector<128x128xbf16>
      %77 = arith.truncf %68 : vector<128x128xf32> to vector<128x128xbf16>
      %cst_45 = arith.constant dense<0.000000e+00> : vector<128x128xf32>
      %78 = tpu.matmul %76, %77, %cst_45 {dimension_numbers = #tpu.dot_dimension_numbers<[0], [0], [1], [1], [0, 1, 1, 1], [], []>} : vector<128x128xbf16>, vector<128x128xbf16>, vector<128x128xf32> -> vector<128x128xf32>
      %79 = arith.addf %75, %78 : vector<128x128xf32>
      %c0_46 = arith.constant 0 : index
      %c0_47 = arith.constant 0 : index
      %c0_48 = arith.constant 0 : index
      %80 = vector.load %arg7[%c0_46, %c0_47, %c0_48] : memref<1x128x128xf32, #tpu.memory_space<vmem>>, vector<1x128x128xf32>
      %81 = vector.shape_cast %80 : vector<1x128x128xf32> to vector<128x128xf32>
      %82 = vector.shape_cast %79 : vector<128x128xf32> to vector<1x128x128xf32>
      tpu.vector_store %arg7[%c0_46, %c0_47, %c0_48], %82 {strides = array<i32>} : memref<1x128x128xf32, #tpu.memory_space<vmem>>, vector<1x128x128xf32>,
      %c0_49 = arith.constant 0 : index
      %c0_50 = arith.constant 0 : index
      %c0_51 = arith.constant 0 : index
      %83 = vector.load %arg8[%c0_49, %c0_50, %c0_51] : memref<1x8x128xf32, #tpu.memory_space<vmem>>, vector<1x1x128xf32>
      %84 = vector.shape_cast %83 : vector<1x1x128xf32> to vector<1x128xf32>
      %cst_52 = arith.constant dense<0.000000e+00> : vector<128xf32>
      %85 = vector.multi_reduction <add>, %68, %cst_52 [0] : vector<128x128xf32> to vector<128xf32>
      %86 = vector.shape_cast %85 : vector<128xf32> to vector<1x128xf32>
      %87 = arith.addf %84, %86 : vector<1x128xf32>
      %c0_53 = arith.constant 0 : index
      %c0_54 = arith.constant 0 : index
      %c0_55 = arith.constant 0 : index
      %88 = vector.load %arg8[%c0_53, %c0_54, %c0_55] : memref<1x8x128xf32, #tpu.memory_space<vmem>>, vector<1x1x128xf32>
      %89 = vector.shape_cast %88 : vector<1x1x128xf32> to vector<1x128xf32>
      %90 = vector.shape_cast %87 : vector<1x128xf32> to vector<1x1x128xf32>
      tpu.vector_store %arg8[%c0_53, %c0_54, %c0_55], %90 {strides = array<i32>} : memref<1x8x128xf32, #tpu.memory_space<vmem>>, vector<1x1x128xf32>,
      %c0_56 = arith.constant 0 : index
      %c1 = arith.constant 1 : index
      %c0_57 = arith.constant 0 : index
      %91 = vector.load %arg8[%c0_56, %c1, %c0_57] : memref<1x8x128xf32, #tpu.memory_space<vmem>>, vector<1x1x128xf32>
      %92 = vector.shape_cast %91 : vector<1x1x128xf32> to vector<1x128xf32>
      %93 = arith.mulf %60, %60 : vector<128x128xf32>
      %94 = vector.shape_cast %93 : vector<128x128xf32> to vector<1x128x128xf32>
      %cst_58 = arith.constant dense<0.000000e+00> : vector<1xf32>
      %95 = vector.multi_reduction <add>, %94, %cst_58 [1, 2] : vector<1x128x128xf32> to vector<1xf32>
      %96 = vector.shape_cast %95 : vector<1xf32> to vector<1x1x1xf32>
      %97 = vector.extract %96[0, 0, 0] : f32 from vector<1x1x1xf32>
      %98 = vector.broadcast %97 : f32 to vector<1x128xf32>
      %99 = arith.addf %92, %98 : vector<1x128xf32>
      %c0_59 = arith.constant 0 : index
      %c1_60 = arith.constant 1 : index
      %c0_61 = arith.constant 0 : index
      %100 = vector.load %arg8[%c0_59, %c1_60, %c0_61] : memref<1x8x128xf32, #tpu.memory_space<vmem>>, vector<1x1x128xf32>
      %101 = vector.shape_cast %100 : vector<1x1x128xf32> to vector<1x128xf32>
      %102 = vector.shape_cast %99 : vector<1x128xf32> to vector<1x1x128xf32>
      tpu.vector_store %arg8[%c0_59, %c1_60, %c0_61], %102 {strides = array<i32>} : memref<1x8x128xf32, #tpu.memory_space<vmem>>, vector<1x1x128xf32>,
    } else {
    }
    return
  }
  func.func @transform_0(%arg0: i32, %arg1: i32, %arg2: i32) -> (i32, i32) {
    %c0_i32 = arith.constant 0 : i32
    %c0_i32_0 = arith.constant 0 : i32
    return %arg2, %c0_i32 : i32, i32
  }
  func.func @transform_1(%arg0: i32, %arg1: i32, %arg2: i32) -> (i32, i32) {
    %c0_i32 = arith.constant 0 : i32
    return %arg1, %arg2 : i32, i32
  }
  func.func @transform_2(%arg0: i32, %arg1: i32, %arg2: i32) -> (i32, i32, i32) {
    %c0_i32 = arith.constant 0 : i32
    %c0_i32_0 = arith.constant 0 : i32
    %c0_i32_1 = arith.constant 0 : i32
    return %arg0, %c0_i32, %c0_i32_0 : i32, i32, i32
  }
  func.func @transform_3(%arg0: i32, %arg1: i32, %arg2: i32) -> (i32, i32, i32) {
    %c0_i32 = arith.constant 0 : i32
    %c0_i32_0 = arith.constant 0 : i32
    %c0_i32_1 = arith.constant 0 : i32
    return %arg0, %c0_i32, %c0_i32_0 : i32, i32, i32
  }
  func.func @transform_4(%arg0: i32, %arg1: i32, %arg2: i32) -> (i32, i32, i32) {
    %c0_i32 = arith.constant 0 : i32
    %c0_i32_0 = arith.constant 0 : i32
    %c0_i32_1 = arith.constant 0 : i32
    return %arg0, %c0_i32, %c0_i32_0 : i32, i32, i32
  }
  func.func @transform_5(%arg0: i32, %arg1: i32, %arg2: i32) -> (i32, i32, i32) {
    %c0_i32 = arith.constant 0 : i32
    %c0_i32_0 = arith.constant 0 : i32
    %c0_i32_1 = arith.constant 0 : i32
    return %arg0, %c0_i32, %c0_i32_0 : i32, i32, i32
  }
}

</mosaic_0001>

<llo_original>
// kernel: ffgnn_forward.1
$region0: #{ffgnn_forward.1}
  #allocation0 [shape = 'u32[]', space=smem, size = 0x4, offset = 0x4, fixed_abs, tag = 'smem constant byte address 0x4 - core index']
  #allocation1 [shape = 'u32[72,128]{1,0:T(1,128)}', space=vmem, size = 0x9000, scoped, tag = 'internal scratch']
  #allocation2 [shape = 'f32[512,128]{1,0:T(8,128)}', space=vmem, size = 0x40000, scoped, tag = 'scratch operand']
  #allocation3 [shape = 'f32[128,128]{1,0:T(8,128)}', space=vmem, size = 0x10000, scoped, tag = 'scratch operand']
  %s0 = inlined_call_operand.vmem [shape: f32[256,128], index: 0, kind: input, shape index: {}]
  %s1 = inlined_call_operand.vmem [shape: bf16[256,256], index: 1, kind: input, shape index: {}]
  %s2 = inlined_call_operand.vmem [shape: bf16[3,128,128], index: 2, kind: input, shape index: {}]
  %s3 = inlined_call_operand.vmem [shape: f32[3,8,128], index: 3, kind: input, shape index: {}]
  %s4 = inlined_call_operand.vmem [shape: f32[3,128,128], index: 4, kind: output, shape index: {0}]
  %s5 = inlined_call_operand.vmem [shape: f32[3,8,128], index: 5, kind: output, shape index: {1}]
  %6 = xla_tuple %s4, %s5
  %s7 = sld [smem:[#allocation0]]
  $region114: #{ffgnn_forward.1} parent=0
    _
  %s9 = ssub.s32 1, %s7
  %s10 = scalar_select 0, %s9, %s7
  $region1: #{ffgnn_forward.1} parent=0
    #allocation4 [shape = 'u8[65536]{0}', space=vmem, size = 0x10000, scoped, tag = 'input window, operand 1']
    loop: start=0, step=1, limit=14
    $region2: #{ffgnn_forward.1} parent=1 // loop_pre_header
      _
    $region3: #{ffgnn_forward.1} parent=1 // loop_header
      %s12 = sphi 0, %s16
      %p13 = scmp.ge.s32.totalorder %s12, 14
      %s19 = sphi 0, %s38
      %s20 = sphi 0, %s34
      %s21 = sphi 0, %s30
      %s22 = sphi 0, %s19
      %s23 = sphi 0, %s20
      %s24 = sphi 0, %s21
      %s25 = sphi 0, %s22
      %s26 = sphi 0, %s23
      %s27 = sphi 0, %s24
      %s41 = sphi 0, %s43
      %s44 = sphi 0, %s41
      %s45 = sphi 0, %s44
      %s61 = sphi 0, %s45
      %s69 = sphi 0, %s71
      %s72 = sphi 0, %s69
      %s73 = sphi 0, %s72
      %s89 = sphi 0, %s73
      %s95 = sphi 0, %s97
      %s98 = sphi 0, %s95
      %s99 = sphi 0, %s98
      %s115 = sphi 0, %s99
      %s121 = sphi 0, %s123
      %s124 = sphi 0, %s121
      %s125 = sphi 0, %s124
      %s141 = sphi 0, %s125
      %s147 = sphi 0, %s149
      %s150 = sphi 0, %s147
      %s151 = sphi 0, %s150
      %s167 = sphi 0, %s151
      %s173 = sphi 0, %s175
      %s176 = sphi 0, %s173
      %s177 = sphi 0, %s176
      %s193 = sphi 0, %s177
    $region4: #{ffgnn_forward.1} parent=1 // loop_header_branch
      %15 = sbr.rel (%p13) target = $region8
    $region5: #{ffgnn_forward.1} parent=1 // loop_body
      %s17 = ssub.s32 %s12, 1
      %s18 = ssub.s32 %s12, 2
      %s28 = sadd.s32 1, %s21
      %p29 = scmp.ge.s32.totalorder %s28, 2
      %s30 = scalar_select %p29, 0, %s28
      %s31 = sadd.s32 1, %s20
      %s32 = scalar_select %p29, %s31, %s20
      %p33 = scmp.ge.s32.totalorder %s32, 2
      %s34 = scalar_select %p33, 0, %s32
      %s35 = sadd.s32 1, %s19
      %s36 = scalar_select %p33, %s35, %s19
      %p37 = scmp.ge.s32.totalorder %s36, 3
      %s38 = scalar_select %p37, 0, %s36
      %s39 = ssub.s32 %s21, %s30
      %p40 = scmp.eq.s32.totalorder %s39, 0
      %s42 = sadd.s32 %s41, 1
      %s43 = scalar_select %p40, %s41, %s42
      %p46 = pneg %p40
      %p47 = scmp.eq.s32.totalorder %s12, 11
      %p48 = por %p46, %p47
      %p49 = scmp.ne.s32.totalorder %s41, %s44
      %p50 = scmp.eq.s32.totalorder %s12, 0
      %p51 = por %p49, %p50
      %p52 = scmp.ne.s32.totalorder %s41, %s44
      %p53 = scmp.eq.s32.totalorder %s17, 11
      %p54 = por %p52, %p53
      %p55 = scmp.ne.s32.totalorder %s44, %s45
      %p56 = scmp.eq.s32.totalorder %s17, 0
      %p57 = por %p55, %p56
      %p58 = scmp.ne.s32.totalorder %s44, %s45
      %p59 = scmp.eq.s32.totalorder %s18, 11
      %p60 = por %p58, %p59
      %p62 = scmp.ne.s32.totalorder %s45, %s61
      %p63 = scmp.eq.s32.totalorder %s18, 0
      %p64 = por %p62, %p63
      %s65 = ssub.s32 %s20, %s34
      %s66 = ssub.s32 %s21, %s30
      %s67 = sor.u32 %s65, %s66
      %p68 = scmp.eq.s32.totalorder %s67, 0
      %s70 = sadd.s32 %s69, 1
      %s71 = scalar_select %p68, %s69, %s70
      %p74 = pneg %p68
      %p75 = scmp.eq.s32.totalorder %s12, 11
      %p76 = por %p74, %p75
      %p77 = scmp.ne.s32.totalorder %s69, %s72
      %p78 = scmp.eq.s32.totalorder %s12, 0
      %p79 = por %p77, %p78
      %p80 = scmp.ne.s32.totalorder %s69, %s72
      %p81 = scmp.eq.s32.totalorder %s17, 11
      %p82 = por %p80, %p81
      %p83 = scmp.ne.s32.totalorder %s72, %s73
      %p84 = scmp.eq.s32.totalorder %s17, 0
      %p85 = por %p83, %p84
      %p86 = scmp.ne.s32.totalorder %s72, %s73
      %p87 = scmp.eq.s32.totalorder %s18, 11
      %p88 = por %p86, %p87
      %p90 = scmp.ne.s32.totalorder %s73, %s89
      %p91 = scmp.eq.s32.totalorder %s18, 0
      %p92 = por %p90, %p91
      %s93 = ssub.s32 %s19, %s38
      %p94 = scmp.eq.s32.totalorder %s93, 0
      %s96 = sadd.s32 %s95, 1
      %s97 = scalar_select %p94, %s95, %s96
      %p100 = pneg %p94
      %p101 = scmp.eq.s32.totalorder %s12, 11
      %p102 = por %p100, %p101
      %p103 = scmp.ne.s32.totalorder %s95, %s98
      %p104 = scmp.eq.s32.totalorder %s12, 0
      %p105 = por %p103, %p104
      %p106 = scmp.ne.s32.totalorder %s95, %s98
      %p107 = scmp.eq.s32.totalorder %s17, 11
      %p108 = por %p106, %p107
      %p109 = scmp.ne.s32.totalorder %s98, %s99
      %p110 = scmp.eq.s32.totalorder %s17, 0
      %p111 = por %p109, %p110
      %p112 = scmp.ne.s32.totalorder %s98, %s99
      %p113 = scmp.eq.s32.totalorder %s18, 11
      %p114 = por %p112, %p113
      %p116 = scmp.ne.s32.totalorder %s99, %s115
      %p117 = scmp.eq.s32.totalorder %s18, 0
      %p118 = por %p116, %p117
      %s119 = ssub.s32 %s19, %s38
      %p120 = scmp.eq.s32.totalorder %s119, 0
      %s122 = sadd.s32 %s121, 1
      %s123 = scalar_select %p120, %s121, %s122
      %p126 = pneg %p120
      %p127 = scmp.eq.s32.totalorder %s12, 11
      %p128 = por %p126, %p127
      %p129 = scmp.ne.s32.totalorder %s121, %s124
      %p130 = scmp.eq.s32.totalorder %s12, 0
      %p131 = por %p129, %p130
      %p132 = scmp.ne.s32.totalorder %s121, %s124
      %p133 = scmp.eq.s32.totalorder %s17, 11
      %p134 = por %p132, %p133
      %p135 = scmp.ne.s32.totalorder %s124, %s125
      %p136 = scmp.eq.s32.totalorder %s17, 0
      %p137 = por %p135, %p136
      %p138 = scmp.ne.s32.totalorder %s124, %s125
      %p139 = scmp.eq.s32.totalorder %s18, 11
      %p140 = por %p138, %p139
      %p142 = scmp.ne.s32.totalorder %s125, %s141
      %p143 = scmp.eq.s32.totalorder %s18, 0
      %p144 = por %p142, %p143
      %s145 = ssub.s32 %s19, %s38
      %p146 = scmp.eq.s32.totalorder %s145, 0
      %s148 = sadd.s32 %s147, 1
      %s149 = scalar_select %p146, %s147, %s148
      %p152 = pneg %p146
      %p153 = scmp.eq.s32.totalorder %s12, 11
      %p154 = por %p152, %p153
      %p155 = scmp.ne.s32.totalorder %s147, %s150
      %p156 = scmp.eq.s32.totalorder %s12, 0
      %p157 = por %p155, %p156
      %p158 = scmp.ne.s32.totalorder %s147, %s150
      %p159 = scmp.eq.s32.totalorder %s17, 11
      %p160 = por %p158, %p159
      %p161 = scmp.ne.s32.totalorder %s150, %s151
      %p162 = scmp.eq.s32.totalorder %s17, 0
      %p163 = por %p161, %p162
      %p164 = scmp.ne.s32.totalorder %s150, %s151
      %p165 = scmp.eq.s32.totalorder %s18, 11
      %p166 = por %p164, %p165
      %p168 = scmp.ne.s32.totalorder %s151, %s167
      %p169 = scmp.eq.s32.totalorder %s18, 0
      %p170 = por %p168, %p169
      %s171 = ssub.s32 %s19, %s38
      %p172 = scmp.eq.s32.totalorder %s171, 0
      %s174 = sadd.s32 %s173, 1
      %s175 = scalar_select %p172, %s173, %s174
      %p178 = pneg %p172
      %p179 = scmp.eq.s32.totalorder %s12, 11
      %p180 = por %p178, %p179
      %p181 = scmp.ne.s32.totalorder %s173, %s176
      %p182 = scmp.eq.s32.totalorder %s12, 0
      %p183 = por %p181, %p182
      %p184 = scmp.ne.s32.totalorder %s173, %s176
      %p185 = scmp.eq.s32.totalorder %s17, 11
      %p186 = por %p184, %p185
      %p187 = scmp.ne.s32.totalorder %s176, %s177
      %p188 = scmp.eq.s32.totalorder %s17, 0
      %p189 = por %p187, %p188
      %p190 = scmp.ne.s32.totalorder %s176, %s177
      %p191 = scmp.eq.s32.totalorder %s18, 11
      %p192 = por %p190, %p191
      %p194 = scmp.ne.s32.totalorder %s177, %s193
      %p195 = scmp.eq.s32.totalorder %s18, 0
      %p196 = por %p194, %p195
      %p197 = scmp.le.s32.totalorder 1, %s12
      %p198 = scmp.lt.s32.totalorder %s12, 13
      %p199 = pnand %p197, %p198
      %p200 = pneg %p199
      // Predicated region
      $region9: #{ffgnn_forward.1} parent=5 // pred_check
        _
      $region10: #{ffgnn_forward.1} parent=5 // pred_check_branch
        %202 = sbr.rel (%p199) target = $region12
      $region11: #{ffgnn_forward.1} parent=5 // pred_region
        %s203 = ssub.s32 %s12, 1
      $region12: #{ffgnn_forward.1} parent=5 // pred_fallthru
        _
      %p204 = scmp.lt.s32.totalorder %s12, 12
      // Predicated region
      $region13: #{ffgnn_forward.1} parent=5 // pred_check
        %p205 = pneg %p204
      $region14: #{ffgnn_forward.1} parent=5 // pred_check_branch
        %207 = sbr.rel (%p205) target = $region16
      $region15: #{ffgnn_forward.1} parent=5 // pred_region
        // Predicated region
        $region17: #{ffgnn_forward.1} parent=15 // pred_check
          %p208 = pneg %p51
        $region18: #{ffgnn_forward.1} parent=15 // pred_check_branch
          %210 = sbr.rel (%p208) target = $region20
        $region19: #{ffgnn_forward.1} parent=15 // pred_region
          %s211 = smul.u32 16, %s21
          %p212 = scmp.lt.s32.totalorder %s211, 31
          %s213 = scalar_select %p212, %s211, 31
          %s214 = smul.addr %s213, 8
          %s215 = scalar_lea.vmem %s0, %s214
          %s216 = smul.u32 16, %s21
        $region20: #{ffgnn_forward.1} parent=15 // pred_fallthru
          _
        // Predicated region
        $region21: #{ffgnn_forward.1} parent=15 // pred_check
          %p217 = pneg %p79
        $region22: #{ffgnn_forward.1} parent=15 // pred_check_branch
          %219 = sbr.rel (%p217) target = $region24
        $region23: #{ffgnn_forward.1} parent=15 // pred_region
          %s220 = sand.u32 %s69, 1
          %s221 = sand.u32 %s69, 1
          %s222 = smul.addr %s221, 64
          %s223 = scalar_lea.vmem [#allocation4], %s222
          %s224 = smul.u32 16, %s20
          %s225 = smul.addr %s224, 2
          %s226 = sadd.s32 %s21, %s225
          %s227 = smul.addr %s226, 4
          %s228 = scalar_lea.vmem %s1, %s227
          // Predicated region
          $region25: #{ffgnn_forward.1} parent=23 // pred_check
            _
          $region26: #{ffgnn_forward.1} parent=23 // pred_check_branch
            %230 = sbr.rel (0) target = $region28
          $region27: #{ffgnn_forward.1} parent=23 // pred_region
            // Predicated region
            $region29: #{ffgnn_forward.1} parent=27 // pred_check
              _
            $region30: #{ffgnn_forward.1} parent=27 // pred_check_branch
              %232 = sbr.rel target = $region32
            $region31: #{ffgnn_forward.1} parent=27 // pred_region
              // Predicated region
              $region44: #{ffgnn_forward.1} parent=31 // pred_check
                _
              $region45: #{ffgnn_forward.1} parent=31 // pred_check_branch
                %278 = sbr.rel (0) target = $region47
              $region46: #{ffgnn_forward.1} parent=31 // pred_region
                loop: start=0, step=1, limit=1
                $region48: #{ffgnn_forward.1} parent=46 // loop_pre_header
                  _
                $region49: #{ffgnn_forward.1} parent=46 // loop_header
                  %s280 = sphi 0, %s284
                  %p281 = scmp.ge.s32.totalorder %s280, 1
                  %s285 = sphi %s228, %s228
                  %s286 = sphi %s223, %s223
                $region50: #{ffgnn_forward.1} parent=46 // loop_header_branch
                  %283 = sbr.rel (%p281) target = $region54
                $region51: #{ffgnn_forward.1} parent=46 // loop_body
                  _
                $region52: #{ffgnn_forward.1} parent=46 // loop_footer
                  %s284 = sadd.s32 1, %s280
                $region53: #{ffgnn_forward.1} parent=46 // loop_footer_branch
                  %279 = sbr.rel target = $region49
                $region54: #{ffgnn_forward.1} parent=46 // loop_exit
                  _
                %s288 = ssub.s32 16, 1
                loop: start=0, step=1, limit=1
                $region55: #{ffgnn_forward.1} parent=46 // loop_pre_header
                  _
                $region56: #{ffgnn_forward.1} parent=46 // loop_header
                  %s290 = sphi 0, %s294
                  %p291 = scmp.ge.s32.totalorder %s290, 1
                  %s295 = sphi %s228, %s228
                  %s296 = sphi %s223, %s223
                $region57: #{ffgnn_forward.1} parent=46 // loop_header_branch
                  %293 = sbr.rel (%p291) target = $region61
                $region58: #{ffgnn_forward.1} parent=46 // loop_body
                  %v297 = vld [vmem:[%s295] sm:%s288]
                  %298 = vst [vmem:[%s296] sm:%s288] %v297
                  %v299 = vld [vmem:[%s295 + $0x8] sm:%s288]
                  %300 = vst [vmem:[%s296 + $0x4] sm:%s288] %v299
                  %v301 = vld [vmem:[%s295 + $0x10] sm:%s288]
                  %302 = vst [vmem:[%s296 + $0x8] sm:%s288] %v301
                  %v303 = vld [vmem:[%s295 + $0x18] sm:%s288]
                  %304 = vst [vmem:[%s296 + $0xc] sm:%s288] %v303
                  %v305 = vld [vmem:[%s295 + $0x20] sm:%s288]
                  %306 = vst [vmem:[%s296 + $0x10] sm:%s288] %v305
                  %v307 = vld [vmem:[%s295 + $0x28] sm:%s288]
                  %308 = vst [vmem:[%s296 + $0x14] sm:%s288] %v307
                  %v309 = vld [vmem:[%s295 + $0x30] sm:%s288]
                  %310 = vst [vmem:[%s296 + $0x18] sm:%s288] %v309
                  %v311 = vld [vmem:[%s295 + $0x38] sm:%s288]
                  %312 = vst [vmem:[%s296 + $0x1c] sm:%s288] %v311
                  %v313 = vld [vmem:[%s295 + $0x40] sm:%s288]
                  %314 = vst [vmem:[%s296 + $0x20] sm:%s288] %v313
                  %v315 = vld [vmem:[%s295 + $0x48] sm:%s288]
                  %316 = vst [vmem:[%s296 + $0x24] sm:%s288] %v315
                  %v317 = vld [vmem:[%s295 + $0x50] sm:%s288]
                  %318 = vst [vmem:[%s296 + $0x28] sm:%s288] %v317
                  %v319 = vld [vmem:[%s295 + $0x58] sm:%s288]
                  %320 = vst [vmem:[%s296 + $0x2c] sm:%s288] %v319
                  %v321 = vld [vmem:[%s295 + $0x60] sm:%s288]
                  %322 = vst [vmem:[%s296 + $0x30] sm:%s288] %v321
                  %v323 = vld [vmem:[%s295 + $0x68] sm:%s288]
                  %324 = vst [vmem:[%s296 + $0x34] sm:%s288] %v323
                  %v325 = vld [vmem:[%s295 + $0x70] sm:%s288]
                  %326 = vst [vmem:[%s296 + $0x38] sm:%s288] %v325
                  %v327 = vld [vmem:[%s295 + $0x78] sm:%s288]
                  %328 = vst [vmem:[%s296 + $0x3c] sm:%s288] %v327
                $region59: #{ffgnn_forward.1} parent=46 // loop_footer
                  %s294 = sadd.s32 1, %s290
                $region60: #{ffgnn_forward.1} parent=46 // loop_footer_branch
                  %289 = sbr.rel target = $region56
                $region61: #{ffgnn_forward.1} parent=46 // loop_exit
                  _
              $region47: #{ffgnn_forward.1} parent=31 // pred_fallthru
                _
            $region32: #{ffgnn_forward.1} parent=27 // pred_fallthru
              _
            // Predicated region
            $region33: #{ffgnn_forward.1} parent=27 // pred_check
              _
            $region34: #{ffgnn_forward.1} parent=27 // pred_check_branch
              %234 = sbr.rel (0) target = $region36
            $region35: #{ffgnn_forward.1} parent=27 // pred_region
              %s236 = ssub.s32 16, 1
              loop: start=0, step=1, limit=1
              $region37: #{ffgnn_forward.1} parent=35 // loop_pre_header
                _
              $region38: #{ffgnn_forward.1} parent=35 // loop_header
                %s238 = sphi 0, %s242
                %p239 = scmp.ge.s32.totalorder %s238, 1
                %s243 = sphi %s228, %s228
                %s244 = sphi %s223, %s223
              $region39: #{ffgnn_forward.1} parent=35 // loop_header_branch
                %241 = sbr.rel (%p239) target = $region43
              $region40: #{ffgnn_forward.1} parent=35 // loop_body
                %v245 = vld [vmem:[%s243] sm:%s236]
                %246 = vst [vmem:[%s244] sm:%s236] %v245
                %v247 = vld [vmem:[%s243 + $0x8] sm:%s236]
                %248 = vst [vmem:[%s244 + $0x4] sm:%s236] %v247
                %v249 = vld [vmem:[%s243 + $0x10] sm:%s236]
                %250 = vst [vmem:[%s244 + $0x8] sm:%s236] %v249
                %v251 = vld [vmem:[%s243 + $0x18] sm:%s236]
                %252 = vst [vmem:[%s244 + $0xc] sm:%s236] %v251
                %v253 = vld [vmem:[%s243 + $0x20] sm:%s236]
                %254 = vst [vmem:[%s244 + $0x10] sm:%s236] %v253
                %v255 = vld [vmem:[%s243 + $0x28] sm:%s236]
                %256 = vst [vmem:[%s244 + $0x14] sm:%s236] %v255
                %v257 = vld [vmem:[%s243 + $0x30] sm:%s236]
                %258 = vst [vmem:[%s244 + $0x18] sm:%s236] %v257
                %v259 = vld [vmem:[%s243 + $0x38] sm:%s236]
                %260 = vst [vmem:[%s244 + $0x1c] sm:%s236] %v259
                %v261 = vld [vmem:[%s243 + $0x40] sm:%s236]
                %262 = vst [vmem:[%s244 + $0x20] sm:%s236] %v261
                %v263 = vld [vmem:[%s243 + $0x48] sm:%s236]
                %264 = vst [vmem:[%s244 + $0x24] sm:%s236] %v263
                %v265 = vld [vmem:[%s243 + $0x50] sm:%s236]
                %266 = vst [vmem:[%s244 + $0x28] sm:%s236] %v265
                %v267 = vld [vmem:[%s243 + $0x58] sm:%s236]
                %268 = vst [vmem:[%s244 + $0x2c] sm:%s236] %v267
                %v269 = vld [vmem:[%s243 + $0x60] sm:%s236]
                %270 = vst [vmem:[%s244 + $0x30] sm:%s236] %v269
                %v271 = vld [vmem:[%s243 + $0x68] sm:%s236]
                %272 = vst [vmem:[%s244 + $0x34] sm:%s236] %v271
                %v273 = vld [vmem:[%s243 + $0x70] sm:%s236]
                %274 = vst [vmem:[%s244 + $0x38] sm:%s236] %v273
                %v275 = vld [vmem:[%s243 + $0x78] sm:%s236]
                %276 = vst [vmem:[%s244 + $0x3c] sm:%s236] %v275
              $region41: #{ffgnn_forward.1} parent=35 // loop_footer
                %s242 = sadd.s32 1, %s238
              $region42: #{ffgnn_forward.1} parent=35 // loop_footer_branch
                %237 = sbr.rel target = $region38
              $region43: #{ffgnn_forward.1} parent=35 // loop_exit
                _
            $region36: #{ffgnn_forward.1} parent=27 // pred_fallthru
              _
          $region28: #{ffgnn_forward.1} parent=23 // pred_fallthru
            _
          %329 = vnop
        $region24: #{ffgnn_forward.1} parent=15 // pred_fallthru
          _
        // Predicated region
        $region62: #{ffgnn_forward.1} parent=15 // pred_check
          %p330 = pneg %p105
        $region63: #{ffgnn_forward.1} parent=15 // pred_check_branch
          %332 = sbr.rel (%p330) target = $region65
        $region64: #{ffgnn_forward.1} parent=15 // pred_region
          %p333 = scmp.lt.s32.totalorder %s19, 2
          %s334 = scalar_select %p333, %s19, 2
          %s335 = smul.addr %s334, 16
          %s336 = smul.addr %s335, 4
          %s337 = scalar_lea.vmem %s2, %s336
        $region65: #{ffgnn_forward.1} parent=15 // pred_fallthru
          _
        // Predicated region
        $region66: #{ffgnn_forward.1} parent=15 // pred_check
          %p338 = pneg %p131
        $region67: #{ffgnn_forward.1} parent=15 // pred_check_branch
          %340 = sbr.rel (%p338) target = $region69
        $region68: #{ffgnn_forward.1} parent=15 // pred_region
          %p341 = scmp.lt.s32.totalorder %s19, 2
          %s342 = scalar_select %p341, %s19, 2
          %s343 = smul.addr %s342, 8
          %s344 = scalar_lea.vmem %s3, %s343
        $region69: #{ffgnn_forward.1} parent=15 // pred_fallthru
          _
      $region16: #{ffgnn_forward.1} parent=5 // pred_fallthru
        _
      %p345 = scmp.le.s32.totalorder 1, %s12
      %p346 = scmp.lt.s32.totalorder %s12, 13
      %p347 = pnand %p345, %p346
      %p348 = pneg %p347
      // Predicated region
      $region70: #{ffgnn_forward.1} parent=5 // pred_check
        _
      $region71: #{ffgnn_forward.1} parent=5 // pred_check_branch
        %350 = sbr.rel (%p347) target = $region73
      $region72: #{ffgnn_forward.1} parent=5 // pred_region
        %s351 = ssub.s32 %s12, 1
        %s352 = sand.u32 %s72, 1
        %s353 = sand.u32 %s72, 1
        %s354 = smul.addr %s353, 64
        %s355 = scalar_lea.vmem [#allocation4], %s354
        // Predicated region
        $region74: #{ffgnn_forward.1} parent=72 // pred_check
          %p356 = pneg %p85
        $region75: #{ffgnn_forward.1} parent=72 // pred_check_branch
          %358 = sbr.rel (%p356) target = $region77
        $region76: #{ffgnn_forward.1} parent=72 // pred_region
          _
        $region77: #{ffgnn_forward.1} parent=72 // pred_fallthru
          _
        %s359 = smul.u32 16, %s24
        %p360 = scmp.lt.s32.totalorder %s359, 31
        %s361 = scalar_select %p360, %s359, 31
        %s362 = smul.addr %s361, 8
        %s363 = scalar_lea.vmem %s0, %s362
        %p364 = pneg %p57
        %p365 = pneg %p54
        %s366 = sand.u32 %s72, 1
        %s367 = sand.u32 %s72, 1
        %s368 = smul.addr %s367, 64
        %s369 = scalar_lea.vmem [#allocation4], %s368
        %p370 = pneg %p85
        %p371 = pneg %p82
        %p372 = scmp.lt.s32.totalorder %s22, 2
        %s373 = scalar_select %p372, %s22, 2
        %s374 = smul.addr %s373, 16
        %s375 = smul.addr %s374, 4
        %s376 = scalar_lea.vmem %s2, %s375
        %p377 = pneg %p111
        %p378 = pneg %p108
        %p379 = scmp.lt.s32.totalorder %s22, 2
        %s380 = scalar_select %p379, %s22, 2
        %s381 = smul.addr %s380, 8
        %s382 = scalar_lea.vmem %s3, %s381
        %p383 = pneg %p137
        %p384 = pneg %p134
        %p385 = pneg %p163
        %p386 = pneg %p160
        %p387 = scmp.lt.s32.totalorder %s22, 2
        %s388 = scalar_select %p387, %s22, 2
        %s389 = smul.addr %s388, 16
        %s390 = smul.addr %s389, 8
        %s391 = scalar_lea.vmem %s4, %s390
        %p392 = pneg %p189
        %p393 = pneg %p186
        %p394 = scmp.lt.s32.totalorder %s22, 2
        %s395 = scalar_select %p394, %s22, 2
        %s396 = smul.addr %s395, 8
        %s397 = scalar_lea.vmem %s5, %s396
        %s398 = smul.u32 16, %s24
        %p399 = scmp.lt.s32.totalorder %s398, 31
        %s400 = scalar_select %p399, %s398, 31
        %s401 = smul.addr %s400, 8
        %s402 = scalar_lea.vmem %s0, %s401
        %s403 = smul.u32 16, %s24
        %s404 = smul.u32 16, %s23
        %p405 = scmp.lt.s32.totalorder %s22, 2
        %s406 = scalar_select %p405, %s22, 2
        %s407 = smul.addr %s406, 16
        %s408 = smul.addr %s407, 4
        %s409 = scalar_lea.vmem %s2, %s408
        %p410 = scmp.lt.s32.totalorder %s22, 2
        %s411 = scalar_select %p410, %s22, 2
        %s412 = smul.addr %s411, 8
        %s413 = scalar_lea.vmem %s3, %s412
        %p414 = scmp.lt.s32.totalorder %s22, 2
        %s415 = scalar_select %p414, %s22, 2
        %s416 = smul.addr %s415, 16
        %s417 = smul.addr %s416, 8
        %s418 = scalar_lea.vmem %s4, %s417
        %p419 = scmp.lt.s32.totalorder %s22, 2
        %s420 = scalar_select %p419, %s22, 2
        %s421 = smul.addr %s420, 8
        %s422 = scalar_lea.vmem %s5, %s421
        %p423 = scmp.lt.s32.totalorder %s22, 0
        %s424 = ssub.s32 0, %s22
        %s425 = scalar_select %p423, %s424, %s22
        %s426 = sand.u32 %s425, 1
        %s427 = ssub.s32 0, %s426
        %s428 = scalar_select %p423, %s427, %s426
        %p429 = scmp.ne.s32.totalorder %s428, 0
        %p430 = scmp.lt.s32.totalorder %s428, 0
        %p431 = pnand %p430, %p429
        %p432 = pneg %p431
        %s433 = sadd.s32 %s428, 2
        %s434 = scalar_select %p432, %s433, %s428
        %s435 = smul.u32 %s434, 256
        %s436 = sadd.s32 %s22, 1
        %p437 = scmp.lt.s32.totalorder %s436, 0
        %s438 = ssub.s32 0, %s436
        %s439 = scalar_select %p437, %s438, %s436
        %s440 = sand.u32 %s439, 1
        %s441 = ssub.s32 0, %s440
        %s442 = scalar_select %p437, %s441, %s440
        %p443 = scmp.ne.s32.totalorder %s442, 0
        %p444 = scmp.lt.s32.totalorder %s442, 0
        %p445 = pnand %p444, %p443
        %p446 = pneg %p445
        %s447 = sadd.s32 %s442, 2
        %s448 = scalar_select %p446, %s447, %s442
        %s449 = smul.u32 %s448, 256
        %p450 = scmp.eq.s32.totalorder %s22, 0
        %p451 = scmp.eq.s32.totalorder %s23, 0
        %p452 = pnand %p450, %p451
        %p453 = pneg %p452
        // Predicated region
        $region78: #{ffgnn_forward.1} parent=72 // pred_check
          _
        $region79: #{ffgnn_forward.1} parent=72 // pred_check_branch
          %455 = sbr.rel (%p452) target = $region81
        $region80: #{ffgnn_forward.1} parent=72 // pred_region
          %v456 = vld [vmem:[%s402] sm:$0xff]
          %v457 = vld [vmem:[%s402 + $0x8] sm:$0xff]
          %v458 = vld [vmem:[%s402 + $0x10] sm:$0xff]
          %v459 = vld [vmem:[%s402 + $0x18] sm:$0xff]
          %v460 = vld [vmem:[%s402 + $0x20] sm:$0xff]
          %v461 = vld [vmem:[%s402 + $0x28] sm:$0xff]
          %v462 = vld [vmem:[%s402 + $0x30] sm:$0xff]
          %v463 = vld [vmem:[%s402 + $0x38] sm:$0xff]
          %v464 = vld [vmem:[%s402 + $0x40] sm:$0xff]
          %v465 = vld [vmem:[%s402 + $0x48] sm:$0xff]
          %v466 = vld [vmem:[%s402 + $0x50] sm:$0xff]
          %v467 = vld [vmem:[%s402 + $0x58] sm:$0xff]
          %v468 = vld [vmem:[%s402 + $0x60] sm:$0xff]
          %v469 = vld [vmem:[%s402 + $0x68] sm:$0xff]
          %v470 = vld [vmem:[%s402 + $0x70] sm:$0xff]
          %v471 = vld [vmem:[%s402 + $0x78] sm:$0xff]
          %s472 = smul.u32 %s24, 128
          %s473 = scalar_lea.vmem [#allocation2], %s472
          %474 = vst [vmem:[%s473] sm:$0xff] %v456
          %475 = vst [vmem:[%s473 + $0x8] sm:$0xff] %v457
          %476 = vst [vmem:[%s473 + $0x10] sm:$0xff] %v458
          %477 = vst [vmem:[%s473 + $0x18] sm:$0xff] %v459
          %478 = vst [vmem:[%s473 + $0x20] sm:$0xff] %v460
          %479 = vst [vmem:[%s473 + $0x28] sm:$0xff] %v461
          %480 = vst [vmem:[%s473 + $0x30] sm:$0xff] %v462
          %481 = vst [vmem:[%s473 + $0x38] sm:$0xff] %v463
          %482 = vst [vmem:[%s473 + $0x40] sm:$0xff] %v464
          %483 = vst [vmem:[%s473 + $0x48] sm:$0xff] %v465
          %484 = vst [vmem:[%s473 + $0x50] sm:$0xff] %v466
          %485 = vst [vmem:[%s473 + $0x58] sm:$0xff] %v467
          %486 = vst [vmem:[%s473 + $0x60] sm:$0xff] %v468
          %487 = vst [vmem:[%s473 + $0x68] sm:$0xff] %v469
          %488 = vst [vmem:[%s473 + $0x70] sm:$0xff] %v470
          %489 = vst [vmem:[%s473 + $0x78] sm:$0xff] %v471
        $region81: #{ffgnn_forward.1} parent=72 // pred_fallthru
          _
        %p490 = scmp.eq.s32.totalorder %s24, 0
        // Predicated region
        $region82: #{ffgnn_forward.1} parent=72 // pred_check
          %p491 = pneg %p490
        $region83: #{ffgnn_forward.1} parent=72 // pred_check_branch
          %493 = sbr.rel (%p491) target = $region85
        $region84: #{ffgnn_forward.1} parent=72 // pred_region
          %494 = vst [vmem:[#allocation3] sm:$0xff] 0.0
          %495 = vst [vmem:[#allocation3 + $0x8] sm:$0xff] 0.0
          %496 = vst [vmem:[#allocation3 + $0x10] sm:$0xff] 0.0
          %497 = vst [vmem:[#allocation3 + $0x18] sm:$0xff] 0.0
          %498 = vst [vmem:[#allocation3 + $0x20] sm:$0xff] 0.0
          %499 = vst [vmem:[#allocation3 + $0x28] sm:$0xff] 0.0
          %500 = vst [vmem:[#allocation3 + $0x30] sm:$0xff] 0.0
          %501 = vst [vmem:[#allocation3 + $0x38] sm:$0xff] 0.0
          %502 = vst [vmem:[#allocation3 + $0x40] sm:$0xff] 0.0
          %503 = vst [vmem:[#allocation3 + $0x48] sm:$0xff] 0.0
          %504 = vst [vmem:[#allocation3 + $0x50] sm:$0xff] 0.0
          %505 = vst [vmem:[#allocation3 + $0x58] sm:$0xff] 0.0
          %506 = vst [vmem:[#allocation3 + $0x60] sm:$0xff] 0.0
          %507 = vst [vmem:[#allocation3 + $0x68] sm:$0xff] 0.0
          %508 = vst [vmem:[#allocation3 + $0x70] sm:$0xff] 0.0
          %509 = vst [vmem:[#allocation3 + $0x78] sm:$0xff] 0.0
        $region85: #{ffgnn_forward.1} parent=72 // pred_fallthru
          _
        %p510 = pnand %p451, %p490
        %p511 = pneg %p510
        // Predicated region
        $region86: #{ffgnn_forward.1} parent=72 // pred_check
          _
        $region87: #{ffgnn_forward.1} parent=72 // pred_check_branch
          %513 = sbr.rel (%p510) target = $region89
        $region88: #{ffgnn_forward.1} parent=72 // pred_region
          %514 = vst [vmem:[%s418] sm:$0xff] 0.0
          %515 = vst [vmem:[%s418 + $0x8] sm:$0xff] 0.0
          %516 = vst [vmem:[%s418 + $0x10] sm:$0xff] 0.0
          %517 = vst [vmem:[%s418 + $0x18] sm:$0xff] 0.0
          %518 = vst [vmem:[%s418 + $0x20] sm:$0xff] 0.0
          %519 = vst [vmem:[%s418 + $0x28] sm:$0xff] 0.0
          %520 = vst [vmem:[%s418 + $0x30] sm:$0xff] 0.0
          %521 = vst [vmem:[%s418 + $0x38] sm:$0xff] 0.0
          %522 = vst [vmem:[%s418 + $0x40] sm:$0xff] 0.0
          %523 = vst [vmem:[%s418 + $0x48] sm:$0xff] 0.0
          %524 = vst [vmem:[%s418 + $0x50] sm:$0xff] 0.0
          %525 = vst [vmem:[%s418 + $0x58] sm:$0xff] 0.0
          %526 = vst [vmem:[%s418 + $0x60] sm:$0xff] 0.0
          %527 = vst [vmem:[%s418 + $0x68] sm:$0xff] 0.0
          %528 = vst [vmem:[%s418 + $0x70] sm:$0xff] 0.0
          %529 = vst [vmem:[%s418 + $0x78] sm:$0xff] 0.0
          %530 = vst [vmem:[%s422] sm:$0xff] 0.0
        $region89: #{ffgnn_forward.1} parent=72 // pred_fallthru
          _
        %s531 = smul.u32 %s24, 128
        %s532 = sadd.s32 %s435, %s531
        %s533 = scalar_lea.vmem [#allocation2], %s532
        %v534 = vld [vmem:[%s533] sm:$0xff]
        %v535 = vld [vmem:[%s533 + $0x8] sm:$0xff]
        %v536 = vld [vmem:[%s533 + $0x10] sm:$0xff]
        %v537 = vld [vmem:[%s533 + $0x18] sm:$0xff]
        %v538 = vld [vmem:[%s533 + $0x20] sm:$0xff]
        %v539 = vld [vmem:[%s533 + $0x28] sm:$0xff]
        %v540 = vld [vmem:[%s533 + $0x30] sm:$0xff]
        %v541 = vld [vmem:[%s533 + $0x38] sm:$0xff]
        %v542 = vld [vmem:[%s533 + $0x40] sm:$0xff]
        %v543 = vld [vmem:[%s533 + $0x48] sm:$0xff]
        %v544 = vld [vmem:[%s533 + $0x50] sm:$0xff]
        %v545 = vld [vmem:[%s533 + $0x58] sm:$0xff]
        %v546 = vld [vmem:[%s533 + $0x60] sm:$0xff]
        %v547 = vld [vmem:[%s533 + $0x68] sm:$0xff]
        %v548 = vld [vmem:[%s533 + $0x70] sm:$0xff]
        %v549 = vld [vmem:[%s533 + $0x78] sm:$0xff]
        %v550 = vld [vmem:[#allocation3] sm:$0xff]
        %v551 = vld [vmem:[#allocation3 + $0x8] sm:$0xff]
        %v552 = vld [vmem:[#allocation3 + $0x10] sm:$0xff]
        %v553 = vld [vmem:[#allocation3 + $0x18] sm:$0xff]
        %v554 = vld [vmem:[#allocation3 + $0x20] sm:$0xff]
        %v555 = vld [vmem:[#allocation3 + $0x28] sm:$0xff]
        %v556 = vld [vmem:[#allocation3 + $0x30] sm:$0xff]
        %v557 = vld [vmem:[#allocation3 + $0x38] sm:$0xff]
        %v558 = vld [vmem:[#allocation3 + $0x40] sm:$0xff]
        %v559 = vld [vmem:[#allocation3 + $0x48] sm:$0xff]
        %v560 = vld [vmem:[#allocation3 + $0x50] sm:$0xff]
        %v561 = vld [vmem:[#allocation3 + $0x58] sm:$0xff]
        %v562 = vld [vmem:[#allocation3 + $0x60] sm:$0xff]
        %v563 = vld [vmem:[#allocation3 + $0x68] sm:$0xff]
        %v564 = vld [vmem:[#allocation3 + $0x70] sm:$0xff]
        %v565 = vld [vmem:[#allocation3 + $0x78] sm:$0xff]
        %v566 = vld [vmem:[%s355] sm:$0xf]
        %v567 = vld [vmem:[%s355 + $0x4] sm:$0xf]
        %v568 = vld [vmem:[%s355 + $0x8] sm:$0xf]
        %v569 = vld [vmem:[%s355 + $0xc] sm:$0xf]
        %v570 = vld [vmem:[%s355 + $0x10] sm:$0xf]
        %v571 = vld [vmem:[%s355 + $0x14] sm:$0xf]
        %v572 = vld [vmem:[%s355 + $0x18] sm:$0xf]
        %v573 = vld [vmem:[%s355 + $0x1c] sm:$0xf]
        %v574 = vld [vmem:[%s355 + $0x20] sm:$0xf]
        %v575 = vld [vmem:[%s355 + $0x24] sm:$0xf]
        %v576 = vld [vmem:[%s355 + $0x28] sm:$0xf]
        %v577 = vld [vmem:[%s355 + $0x2c] sm:$0xf]
        %v578 = vld [vmem:[%s355 + $0x30] sm:$0xf]
        %v579 = vld [vmem:[%s355 + $0x34] sm:$0xf]
        %v580 = vld [vmem:[%s355 + $0x38] sm:$0xf]
        %v581 = vld [vmem:[%s355 + $0x3c] sm:$0xf]
        %v582 = vpack.c.bf16 %v535, %v534
        %v583 = vpack.c.bf16 %v537, %v536
        %v584 = vpack.c.bf16 %v539, %v538
        %v585 = vpack.c.bf16 %v541, %v540
        %v586 = vpack.c.bf16 %v543, %v542
        %v587 = vpack.c.bf16 %v545, %v544
        %v588 = vpack.c.bf16 %v547, %v546
        %v589 = vpack.c.bf16 %v549, %v548
        %v606 = vunpack.c.l.b16 %v566
        %v607 = vunpack.c.l.b16 %v567
        %v608 = vunpack.c.l.b16 %v568
        %v609 = vunpack.c.l.b16 %v569
        %v610 = vunpack.c.l.b16 %v570
        %v611 = vunpack.c.l.b16 %v571
        %v612 = vunpack.c.l.b16 %v572
        %v613 = vunpack.c.l.b16 %v573
        %v614 = vunpack.c.l.b16 %v574
        %v615 = vunpack.c.l.b16 %v575
        %v616 = vunpack.c.l.b16 %v576
        %v617 = vunpack.c.l.b16 %v577
        %v618 = vunpack.c.l.b16 %v578
        %v619 = vunpack.c.l.b16 %v579
        %v620 = vunpack.c.l.b16 %v580
        %v621 = vunpack.c.l.b16 %v581
        %v622 = vpack.c.b16 %v607, %v606
        %v623 = vpack.c.b16 %v609, %v608
        %v624 = vpack.c.b16 %v611, %v610
        %v625 = vpack.c.b16 %v613, %v612
        %v626 = vpack.c.b16 %v615, %v614
        %v627 = vpack.c.b16 %v617, %v616
        %v628 = vpack.c.b16 %v619, %v618
        %v629 = vpack.c.b16 %v621, %v620
        %638 = vmatpush.bf16.msra.mxu0 %v589
        %639 = vmatpush.bf16.msra.mxu0 %v588
        %640 = vmatpush.bf16.msra.mxu0 %v587
        %641 = vmatpush.bf16.msra.mxu0 %v586
        %642 = vmatpush.bf16.msra.mxu0 %v585
        %643 = vmatpush.bf16.msra.mxu0 %v584
        %644 = vmatpush.bf16.msra.mxu0 %v583
        %645 = vmatpush.bf16.msra.mxu0 %v582
        %646 = vmatmul.bf16.gmra.mxu0 %v622
        %v647 = vpop.f32.mrf.mxu0
        %v648 = vadd.f32 0.0, %v647
        %v649 = vpop.f32.mrf.mxu0
        %v650 = vadd.f32 0.0, %v649
        %651 = vmatmul.bf16.gmra.mxu0 %v623
        %v652 = vpop.f32.mrf.mxu0
        %v653 = vadd.f32 0.0, %v652
        %v654 = vpop.f32.mrf.mxu0
        %v655 = vadd.f32 0.0, %v654
        %656 = vmatmul.bf16.gmra.mxu0 %v624
        %v657 = vpop.f32.mrf.mxu0
        %v658 = vadd.f32 0.0, %v657
        %v659 = vpop.f32.mrf.mxu0
        %v660 = vadd.f32 0.0, %v659
        %661 = vmatmul.bf16.gmra.mxu0 %v625
        %v662 = vpop.f32.mrf.mxu0
        %v663 = vadd.f32 0.0, %v662
        %v664 = vpop.f32.mrf.mxu0
        %v665 = vadd.f32 0.0, %v664
        %666 = vmatmul.bf16.gmra.mxu0 %v626
        %v667 = vpop.f32.mrf.mxu0
        %v668 = vadd.f32 0.0, %v667
        %v669 = vpop.f32.mrf.mxu0
        %v670 = vadd.f32 0.0, %v669
        %671 = vmatmul.bf16.gmra.mxu0 %v627
        %v672 = vpop.f32.mrf.mxu0
        %v673 = vadd.f32 0.0, %v672
        %v674 = vpop.f32.mrf.mxu0
        %v675 = vadd.f32 0.0, %v674
        %676 = vmatmul.bf16.gmra.mxu0 %v628
        %v677 = vpop.f32.mrf.mxu0
        %v678 = vadd.f32 0.0, %v677
        %v679 = vpop.f32.mrf.mxu0
        %v680 = vadd.f32 0.0, %v679
        %681 = vmatmul.bf16.gmra.mxu0 %v629
        %v682 = vpop.f32.mrf.mxu0
        %v683 = vadd.f32 0.0, %v682
        %v684 = vpop.f32.mrf.mxu0
        %v685 = vadd.f32 0.0, %v684
        %686 = vdwg.mxu0
        %v687 = vadd.f32 %v550, %v648
        %v688 = vadd.f32 %v551, %v650
        %v689 = vadd.f32 %v552, %v653
        %v690 = vadd.f32 %v553, %v655
        %v691 = vadd.f32 %v554, %v658
        %v692 = vadd.f32 %v555, %v660
        %v693 = vadd.f32 %v556, %v663
        %v694 = vadd.f32 %v557, %v665
        %v695 = vadd.f32 %v558, %v668
        %v696 = vadd.f32 %v559, %v670
        %v697 = vadd.f32 %v560, %v673
        %v698 = vadd.f32 %v561, %v675
        %v699 = vadd.f32 %v562, %v678
        %v700 = vadd.f32 %v563, %v680
        %v701 = vadd.f32 %v564, %v683
        %v702 = vadd.f32 %v565, %v685
        %703 = vst [vmem:[#allocation3] sm:$0xff] %v687
        %704 = vst [vmem:[#allocation3 + $0x8] sm:$0xff] %v688
        %705 = vst [vmem:[#allocation3 + $0x10] sm:$0xff] %v689
        %706 = vst [vmem:[#allocation3 + $0x18] sm:$0xff] %v690
        %707 = vst [vmem:[#allocation3 + $0x20] sm:$0xff] %v691
        %708 = vst [vmem:[#allocation3 + $0x28] sm:$0xff] %v692
        %709 = vst [vmem:[#allocation3 + $0x30] sm:$0xff] %v693
        %710 = vst [vmem:[#allocation3 + $0x38] sm:$0xff] %v694
        %711 = vst [vmem:[#allocation3 + $0x40] sm:$0xff] %v695
        %712 = vst [vmem:[#allocation3 + $0x48] sm:$0xff] %v696
        %713 = vst [vmem:[#allocation3 + $0x50] sm:$0xff] %v697
        %714 = vst [vmem:[#allocation3 + $0x58] sm:$0xff] %v698
        %715 = vst [vmem:[#allocation3 + $0x60] sm:$0xff] %v699
        %716 = vst [vmem:[#allocation3 + $0x68] sm:$0xff] %v700
        %717 = vst [vmem:[#allocation3 + $0x70] sm:$0xff] %v701
        %718 = vst [vmem:[#allocation3 + $0x78] sm:$0xff] %v702
        %p719 = scmp.eq.s32.totalorder %s24, 1
        // Predicated region
        $region90: #{ffgnn_forward.1} parent=72 // pred_check
          %p720 = pneg %p719
        $region91: #{ffgnn_forward.1} parent=72 // pred_check_branch
          %722 = sbr.rel (%p720) target = $region93
        $region92: #{ffgnn_forward.1} parent=72 // pred_region
          %v723 = vld [vmem:[#allocation3] sm:$0xff]
          %v724 = vld [vmem:[#allocation3 + $0x8] sm:$0xff]
          %v725 = vld [vmem:[#allocation3 + $0x10] sm:$0xff]
          %v726 = vld [vmem:[#allocation3 + $0x18] sm:$0xff]
          %v727 = vld [vmem:[#allocation3 + $0x20] sm:$0xff]
          %v728 = vld [vmem:[#allocation3 + $0x28] sm:$0xff]
          %v729 = vld [vmem:[#allocation3 + $0x30] sm:$0xff]
          %v730 = vld [vmem:[#allocation3 + $0x38] sm:$0xff]
          %v731 = vld [vmem:[#allocation3 + $0x40] sm:$0xff]
          %v732 = vld [vmem:[#allocation3 + $0x48] sm:$0xff]
          %v733 = vld [vmem:[#allocation3 + $0x50] sm:$0xff]
          %v734 = vld [vmem:[#allocation3 + $0x58] sm:$0xff]
          %v735 = vld [vmem:[#allocation3 + $0x60] sm:$0xff]
          %v736 = vld [vmem:[#allocation3 + $0x68] sm:$0xff]
          %v737 = vld [vmem:[#allocation3 + $0x70] sm:$0xff]
          %v738 = vld [vmem:[#allocation3 + $0x78] sm:$0xff]
          %v739 = vpack.c.bf16 %v724, %v723
          %v740 = vpack.c.bf16 %v726, %v725
          %v741 = vpack.c.bf16 %v728, %v727
          %v742 = vpack.c.bf16 %v730, %v729
          %v743 = vpack.c.bf16 %v732, %v731
          %v744 = vpack.c.bf16 %v734, %v733
          %v745 = vpack.c.bf16 %v736, %v735
          %v746 = vpack.c.bf16 %v738, %v737
          %v747 = vld [vmem:[%s409] sm:$0xf]
          %v748 = vld [vmem:[%s409 + $0x4] sm:$0xf]
          %v749 = vld [vmem:[%s409 + $0x8] sm:$0xf]
          %v750 = vld [vmem:[%s409 + $0xc] sm:$0xf]
          %v751 = vld [vmem:[%s409 + $0x10] sm:$0xf]
          %v752 = vld [vmem:[%s409 + $0x14] sm:$0xf]
          %v753 = vld [vmem:[%s409 + $0x18] sm:$0xf]
          %v754 = vld [vmem:[%s409 + $0x1c] sm:$0xf]
          %v755 = vld [vmem:[%s409 + $0x20] sm:$0xf]
          %v756 = vld [vmem:[%s409 + $0x24] sm:$0xf]
          %v757 = vld [vmem:[%s409 + $0x28] sm:$0xf]
          %v758 = vld [vmem:[%s409 + $0x2c] sm:$0xf]
          %v759 = vld [vmem:[%s409 + $0x30] sm:$0xf]
          %v760 = vld [vmem:[%s409 + $0x34] sm:$0xf]
          %v761 = vld [vmem:[%s409 + $0x38] sm:$0xf]
          %v762 = vld [vmem:[%s409 + $0x3c] sm:$0xf]
          %v763 = vld [vmem:[%s413] sm:$0x1]
          %v764 = vperm.slane %v763, 0
          %v781 = vunpack.c.l.b16 %v747
          %v782 = vunpack.c.l.b16 %v748
          %v783 = vunpack.c.l.b16 %v749
          %v784 = vunpack.c.l.b16 %v750
          %v785 = vunpack.c.l.b16 %v751
          %v786 = vunpack.c.l.b16 %v752
          %v787 = vunpack.c.l.b16 %v753
          %v788 = vunpack.c.l.b16 %v754
          %v789 = vunpack.c.l.b16 %v755
          %v790 = vunpack.c.l.b16 %v756
          %v791 = vunpack.c.l.b16 %v757
          %v792 = vunpack.c.l.b16 %v758
          %v793 = vunpack.c.l.b16 %v759
          %v794 = vunpack.c.l.b16 %v760
          %v795 = vunpack.c.l.b16 %v761
          %v796 = vunpack.c.l.b16 %v762
          %v797 = vpack.c.b16 %v782, %v781
          %v798 = vpack.c.b16 %v784, %v783
          %v799 = vpack.c.b16 %v786, %v785
          %v800 = vpack.c.b16 %v788, %v787
          %v801 = vpack.c.b16 %v790, %v789
          %v802 = vpack.c.b16 %v792, %v791
          %v803 = vpack.c.b16 %v794, %v793
          %v804 = vpack.c.b16 %v796, %v795
          %813 = vmatpush.bf16.msra.mxu0 %v804
          %814 = vmatpush.bf16.msra.mxu0 %v803
          %815 = vmatpush.bf16.msra.mxu0 %v802
          %816 = vmatpush.bf16.msra.mxu0 %v801
          %817 = vmatpush.bf16.msra.mxu0 %v800
          %818 = vmatpush.bf16.msra.mxu0 %v799
          %819 = vmatpush.bf16.msra.mxu0 %v798
          %820 = vmatpush.bf16.msra.mxu0 %v797
          %821 = vmatmul.bf16.gmra.mxu0 %v739
          %v822 = vpop.f32.mrf.mxu0
          %v823 = vadd.f32 %v764, %v822
          %v824 = vpop.f32.mrf.mxu0
          %v825 = vadd.f32 %v764, %v824
          %826 = vmatmul.bf16.gmra.mxu0 %v740
          %v827 = vpop.f32.mrf.mxu0
          %v828 = vadd.f32 %v764, %v827
          %v829 = vpop.f32.mrf.mxu0
          %v830 = vadd.f32 %v764, %v829
          %831 = vmatmul.bf16.gmra.mxu0 %v741
          %v832 = vpop.f32.mrf.mxu0
          %v833 = vadd.f32 %v764, %v832
          %v834 = vpop.f32.mrf.mxu0
          %v835 = vadd.f32 %v764, %v834
          %836 = vmatmul.bf16.gmra.mxu0 %v742
          %v837 = vpop.f32.mrf.mxu0
          %v838 = vadd.f32 %v764, %v837
          %v839 = vpop.f32.mrf.mxu0
          %v840 = vadd.f32 %v764, %v839
          %841 = vmatmul.bf16.gmra.mxu0 %v743
          %v842 = vpop.f32.mrf.mxu0
          %v843 = vadd.f32 %v764, %v842
          %v844 = vpop.f32.mrf.mxu0
          %v845 = vadd.f32 %v764, %v844
          %846 = vmatmul.bf16.gmra.mxu0 %v744
          %v847 = vpop.f32.mrf.mxu0
          %v848 = vadd.f32 %v764, %v847
          %v849 = vpop.f32.mrf.mxu0
          %v850 = vadd.f32 %v764, %v849
          %851 = vmatmul.bf16.gmra.mxu0 %v745
          %v852 = vpop.f32.mrf.mxu0
          %v853 = vadd.f32 %v764, %v852
          %v854 = vpop.f32.mrf.mxu0
          %v855 = vadd.f32 %v764, %v854
          %856 = vmatmul.bf16.gmra.mxu0 %v746
          %v857 = vpop.f32.mrf.mxu0
          %v858 = vadd.f32 %v764, %v857
          %v859 = vpop.f32.mrf.mxu0
          %v860 = vadd.f32 %v764, %v859
          %861 = vdwg.mxu0
          %v862 = vmax.f32 %v823, 0.0
          %v863 = vmax.f32 %v825, 0.0
          %v864 = vmax.f32 %v828, 0.0
          %v865 = vmax.f32 %v830, 0.0
          %v866 = vmax.f32 %v833, 0.0
          %v867 = vmax.f32 %v835, 0.0
          %v868 = vmax.f32 %v838, 0.0
          %v869 = vmax.f32 %v840, 0.0
          %v870 = vmax.f32 %v843, 0.0
          %v871 = vmax.f32 %v845, 0.0
          %v872 = vmax.f32 %v848, 0.0
          %v873 = vmax.f32 %v850, 0.0
          %v874 = vmax.f32 %v853, 0.0
          %v875 = vmax.f32 %v855, 0.0
          %v876 = vmax.f32 %v858, 0.0
          %v877 = vmax.f32 %v860, 0.0
          %s878 = smul.u32 %s23, 128
          %s879 = sadd.s32 %s449, %s878
          %s880 = scalar_lea.vmem [#allocation2], %s879
          %881 = vst [vmem:[%s880] sm:$0xff] %v862
          %882 = vst [vmem:[%s880 + $0x8] sm:$0xff] %v863
          %883 = vst [vmem:[%s880 + $0x10] sm:$0xff] %v864
          %884 = vst [vmem:[%s880 + $0x18] sm:$0xff] %v865
          %885 = vst [vmem:[%s880 + $0x20] sm:$0xff] %v866
          %886 = vst [vmem:[%s880 + $0x28] sm:$0xff] %v867
          %887 = vst [vmem:[%s880 + $0x30] sm:$0xff] %v868
          %888 = vst [vmem:[%s880 + $0x38] sm:$0xff] %v869
          %889 = vst [vmem:[%s880 + $0x40] sm:$0xff] %v870
          %890 = vst [vmem:[%s880 + $0x48] sm:$0xff] %v871
          %891 = vst [vmem:[%s880 + $0x50] sm:$0xff] %v872
          %892 = vst [vmem:[%s880 + $0x58] sm:$0xff] %v873
          %893 = vst [vmem:[%s880 + $0x60] sm:$0xff] %v874
          %894 = vst [vmem:[%s880 + $0x68] sm:$0xff] %v875
          %895 = vst [vmem:[%s880 + $0x70] sm:$0xff] %v876
          %896 = vst [vmem:[%s880 + $0x78] sm:$0xff] %v877
          %v897 = vmul.f32 %v862, 4.0
          %v898 = vmul.f32 %v863, 4.0
          %v899 = vmul.f32 %v864, 4.0
          %v900 = vmul.f32 %v865, 4.0
          %v901 = vmul.f32 %v866, 4.0
          %v902 = vmul.f32 %v867, 4.0
          %v903 = vmul.f32 %v868, 4.0
          %v904 = vmul.f32 %v869, 4.0
          %v905 = vmul.f32 %v870, 4.0
          %v906 = vmul.f32 %v871, 4.0
          %v907 = vmul.f32 %v872, 4.0
          %v908 = vmul.f32 %v873, 4.0
          %v909 = vmul.f32 %v874, 4.0
          %v910 = vmul.f32 %v875, 4.0
          %v911 = vmul.f32 %v876, 4.0
          %v912 = vmul.f32 %v877, 4.0
          %v913 = vmul.f32 %v897, %v862
          %v914 = vmul.f32 %v898, %v863
          %v915 = vmul.f32 %v899, %v864
          %v916 = vmul.f32 %v900, %v865
          %v917 = vmul.f32 %v901, %v866
          %v918 = vmul.f32 %v902, %v867
          %v919 = vmul.f32 %v903, %v868
          %v920 = vmul.f32 %v904, %v869
          %v921 = vmul.f32 %v905, %v870
          %v922 = vmul.f32 %v906, %v871
          %v923 = vmul.f32 %v907, %v872
          %v924 = vmul.f32 %v908, %v873
          %v925 = vmul.f32 %v909, %v874
          %v926 = vmul.f32 %v910, %v875
          %v927 = vmul.f32 %v911, %v876
          %v928 = vmul.f32 %v912, %v877
          %s929 = sadd.s32 %s435, %s878
          %s930 = scalar_lea.vmem [#allocation2], %s929
          %v931 = vld [vmem:[%s930] sm:$0xff]
          %v932 = vld [vmem:[%s930 + $0x8] sm:$0xff]
          %v933 = vld [vmem:[%s930 + $0x10] sm:$0xff]
          %v934 = vld [vmem:[%s930 + $0x18] sm:$0xff]
          %v935 = vld [vmem:[%s930 + $0x20] sm:$0xff]
          %v936 = vld [vmem:[%s930 + $0x28] sm:$0xff]
          %v937 = vld [vmem:[%s930 + $0x30] sm:$0xff]
          %v938 = vld [vmem:[%s930 + $0x38] sm:$0xff]
          %v939 = vld [vmem:[%s930 + $0x40] sm:$0xff]
          %v940 = vld [vmem:[%s930 + $0x48] sm:$0xff]
          %v941 = vld [vmem:[%s930 + $0x50] sm:$0xff]
          %v942 = vld [vmem:[%s930 + $0x58] sm:$0xff]
          %v943 = vld [vmem:[%s930 + $0x60] sm:$0xff]
          %v944 = vld [vmem:[%s930 + $0x68] sm:$0xff]
          %v945 = vld [vmem:[%s930 + $0x70] sm:$0xff]
          %v946 = vld [vmem:[%s930 + $0x78] sm:$0xff]
          %v947 = vld [vmem:[%s418] sm:$0xff]
          %v948 = vld [vmem:[%s418 + $0x8] sm:$0xff]
          %v949 = vld [vmem:[%s418 + $0x10] sm:$0xff]
          %v950 = vld [vmem:[%s418 + $0x18] sm:$0xff]
          %v951 = vld [vmem:[%s418 + $0x20] sm:$0xff]
          %v952 = vld [vmem:[%s418 + $0x28] sm:$0xff]
          %v953 = vld [vmem:[%s418 + $0x30] sm:$0xff]
          %v954 = vld [vmem:[%s418 + $0x38] sm:$0xff]
          %v955 = vld [vmem:[%s418 + $0x40] sm:$0xff]
          %v956 = vld [vmem:[%s418 + $0x48] sm:$0xff]
          %v957 = vld [vmem:[%s418 + $0x50] sm:$0xff]
          %v958 = vld [vmem:[%s418 + $0x58] sm:$0xff]
          %v959 = vld [vmem:[%s418 + $0x60] sm:$0xff]
          %v960 = vld [vmem:[%s418 + $0x68] sm:$0xff]
          %v961 = vld [vmem:[%s418 + $0x70] sm:$0xff]
          %v962 = vld [vmem:[%s418 + $0x78] sm:$0xff]
          %v963 = vpack.c.bf16 %v932, %v931
          %v964 = vpack.c.bf16 %v934, %v933
          %v965 = vpack.c.bf16 %v936, %v935
          %v966 = vpack.c.bf16 %v938, %v937
          %v967 = vpack.c.bf16 %v940, %v939
          %v968 = vpack.c.bf16 %v942, %v941
          %v969 = vpack.c.bf16 %v944, %v943
          %v970 = vpack.c.bf16 %v946, %v945
          %v971 = vpack.c.bf16 %v914, %v913
          %v972 = vpack.c.bf16 %v916, %v915
          %v973 = vpack.c.bf16 %v918, %v917
          %v974 = vpack.c.bf16 %v920, %v919
          %v975 = vpack.c.bf16 %v922, %v921
          %v976 = vpack.c.bf16 %v924, %v923
          %v977 = vpack.c.bf16 %v926, %v925
          %v978 = vpack.c.bf16 %v928, %v927
          %979 = vxpose.xlu0.c.b16.start [1/8] %v963, 128
          %980 = vxpose.xlu0.c.b16.cont [2/8] %v964, 128
          %981 = vxpose.xlu0.c.b16.cont [3/8] %v965, 128
          %982 = vxpose.xlu0.c.b16.cont [4/8] %v966, 128
          %983 = vxpose.xlu0.c.b16.cont [5/8] %v967, 128
          %984 = vxpose.xlu0.c.b16.cont [6/8] %v968, 128
          %985 = vxpose.xlu0.c.b16.cont [7/8] %v969, 128
          %986 = vxpose.xlu0.c.b16.end [8/8] %v970, 128
          %v987 = vpop.trf.xlu0
          %v988 = vpop.trf.xlu0
          %v989 = vpop.trf.xlu0
          %v990 = vpop.trf.xlu0
          %v991 = vpop.trf.xlu0
          %v992 = vpop.trf.xlu0
          %v993 = vpop.trf.xlu0
          %v994 = vpop.trf.xlu0
          %995 = vmatpush.bf16.msra.mxu0 %v978
          %996 = vmatpush.bf16.msra.mxu0 %v977
          %997 = vmatpush.bf16.msra.mxu0 %v976
          %998 = vmatpush.bf16.msra.mxu0 %v975
          %999 = vmatpush.bf16.msra.mxu0 %v974
          %1000 = vmatpush.bf16.msra.mxu0 %v973
          %1001 = vmatpush.bf16.msra.mxu0 %v972
          %1002 = vmatpush.bf16.msra.mxu0 %v971
          %1003 = vmatmul.bf16.gmra.mxu0 %v987
          %v1004 = vpop.f32.mrf.mxu0
          %v1005 = vadd.f32 0.0, %v1004
          %v1006 = vpop.f32.mrf.mxu0
          %v1007 = vadd.f32 0.0, %v1006
          %1008 = vmatmul.bf16.gmra.mxu0 %v988
          %v1009 = vpop.f32.mrf.mxu0
          %v1010 = vadd.f32 0.0, %v1009
          %v1011 = vpop.f32.mrf.mxu0
          %v1012 = vadd.f32 0.0, %v1011
          %1013 = vmatmul.bf16.gmra.mxu0 %v989
          %v1014 = vpop.f32.mrf.mxu0
          %v1015 = vadd.f32 0.0, %v1014
          %v1016 = vpop.f32.mrf.mxu0
          %v1017 = vadd.f32 0.0, %v1016
          %1018 = vmatmul.bf16.gmra.mxu0 %v990
          %v1019 = vpop.f32.mrf.mxu0
          %v1020 = vadd.f32 0.0, %v1019
          %v1021 = vpop.f32.mrf.mxu0
          %v1022 = vadd.f32 0.0, %v1021
          %1023 = vmatmul.bf16.gmra.mxu0 %v991
          %v1024 = vpop.f32.mrf.mxu0
          %v1025 = vadd.f32 0.0, %v1024
          %v1026 = vpop.f32.mrf.mxu0
          %v1027 = vadd.f32 0.0, %v1026
          %1028 = vmatmul.bf16.gmra.mxu0 %v992
          %v1029 = vpop.f32.mrf.mxu0
          %v1030 = vadd.f32 0.0, %v1029
          %v1031 = vpop.f32.mrf.mxu0
          %v1032 = vadd.f32 0.0, %v1031
          %1033 = vmatmul.bf16.gmra.mxu0 %v993
          %v1034 = vpop.f32.mrf.mxu0
          %v1035 = vadd.f32 0.0, %v1034
          %v1036 = vpop.f32.mrf.mxu0
          %v1037 = vadd.f32 0.0, %v1036
          %1038 = vmatmul.bf16.gmra.mxu0 %v994
          %v1039 = vpop.f32.mrf.mxu0
          %v1040 = vadd.f32 0.0, %v1039
          %v1041 = vpop.f32.mrf.mxu0
          %v1042 = vadd.f32 0.0, %v1041
          %1043 = vdwg.mxu0
          %v1044 = vadd.f32 %v947, %v1005
          %v1045 = vadd.f32 %v948, %v1007
          %v1046 = vadd.f32 %v949, %v1010
          %v1047 = vadd.f32 %v950, %v1012
          %v1048 = vadd.f32 %v951, %v1015
          %v1049 = vadd.f32 %v952, %v1017
          %v1050 = vadd.f32 %v953, %v1020
          %v1051 = vadd.f32 %v954, %v1022
          %v1052 = vadd.f32 %v955, %v1025
          %v1053 = vadd.f32 %v956, %v1027
          %v1054 = vadd.f32 %v957, %v1030
          %v1055 = vadd.f32 %v958, %v1032
          %v1056 = vadd.f32 %v959, %v1035
          %v1057 = vadd.f32 %v960, %v1037
          %v1058 = vadd.f32 %v961, %v1040
          %v1059 = vadd.f32 %v962, %v1042
          %1060 = vst [vmem:[%s418] sm:$0xff] %v1044
          %1061 = vst [vmem:[%s418 + $0x8] sm:$0xff] %v1045
          %1062 = vst [vmem:[%s418 + $0x10] sm:$0xff] %v1046
          %1063 = vst [vmem:[%s418 + $0x18] sm:$0xff] %v1047
          %1064 = vst [vmem:[%s418 + $0x20] sm:$0xff] %v1048
          %1065 = vst [vmem:[%s418 + $0x28] sm:$0xff] %v1049
          %1066 = vst [vmem:[%s418 + $0x30] sm:$0xff] %v1050
          %1067 = vst [vmem:[%s418 + $0x38] sm:$0xff] %v1051
          %1068 = vst [vmem:[%s418 + $0x40] sm:$0xff] %v1052
          %1069 = vst [vmem:[%s418 + $0x48] sm:$0xff] %v1053
          %1070 = vst [vmem:[%s418 + $0x50] sm:$0xff] %v1054
          %1071 = vst [vmem:[%s418 + $0x58] sm:$0xff] %v1055
          %1072 = vst [vmem:[%s418 + $0x60] sm:$0xff] %v1056
          %1073 = vst [vmem:[%s418 + $0x68] sm:$0xff] %v1057
          %1074 = vst [vmem:[%s418 + $0x70] sm:$0xff] %v1058
          %1075 = vst [vmem:[%s418 + $0x78] sm:$0xff] %v1059
          %v1076 = vld [vmem:[%s422] sm:$0x1]
          %v1077 = vadd.f32 %v913, %v914
          %v1078 = vadd.f32 %v1077, %v915
          %v1079 = vadd.f32 %v1078, %v916
          %v1080 = vadd.f32 %v1079, %v917
          %v1081 = vadd.f32 %v1080, %v918
          %v1082 = vadd.f32 %v1081, %v919
          %v1083 = vadd.f32 %v1082, %v920
          %v1084 = vadd.f32 %v1083, %v921
          %v1085 = vadd.f32 %v1084, %v922
          %v1086 = vadd.f32 %v1085, %v923
          %v1087 = vadd.f32 %v1086, %v924
          %v1088 = vadd.f32 %v1087, %v925
          %v1089 = vadd.f32 %v1088, %v926
          %v1090 = vadd.f32 %v1089, %v927
          %v1091 = vadd.f32 %v1090, %v928
          %v1092 = vrot.slane %v1091, 4
          %v1093 = vadd.f32 %v1091, %v1092
          %v1094 = vrot.slane %v1093, 2
          %v1095 = vadd.f32 %v1093, %v1094
          %v1096 = vrot.slane %v1095, 1
          %v1097 = vadd.f32 %v1095, %v1096
          %v1098 = vadd.f32 %v1076, %v1097
          %1099 = vst [vmem:[%s422] sm:$0x1] %v1098
          %v1100 = vld [vmem:[%s422 + $0x1] sm:$0x1]
          %v1101 = vmul.f32 %v862, %v862
          %v1102 = vmul.f32 %v863, %v863
          %v1103 = vmul.f32 %v864, %v864
          %v1104 = vmul.f32 %v865, %v865
          %v1105 = vmul.f32 %v866, %v866
          %v1106 = vmul.f32 %v867, %v867
          %v1107 = vmul.f32 %v868, %v868
          %v1108 = vmul.f32 %v869, %v869
          %v1109 = vmul.f32 %v870, %v870
          %v1110 = vmul.f32 %v871, %v871
          %v1111 = vmul.f32 %v872, %v872
          %v1112 = vmul.f32 %v873, %v873
          %v1113 = vmul.f32 %v874, %v874
          %v1114 = vmul.f32 %v875, %v875
          %v1115 = vmul.f32 %v876, %v876
          %v1116 = vmul.f32 %v877, %v877
          %v1117 = vadd.f32 %v1101, %v1102
          %v1118 = vadd.f32 %v1117, %v1103
          %v1119 = vadd.f32 %v1118, %v1104
          %v1120 = vadd.f32 %v1119, %v1105
          %v1121 = vadd.f32 %v1120, %v1106
          %v1122 = vadd.f32 %v1121, %v1107
          %v1123 = vadd.f32 %v1122, %v1108
          %v1124 = vadd.f32 %v1123, %v1109
          %v1125 = vadd.f32 %v1124, %v1110
          %v1126 = vadd.f32 %v1125, %v1111
          %v1127 = vadd.f32 %v1126, %v1112
          %v1128 = vadd.f32 %v1127, %v1113
          %v1129 = vadd.f32 %v1128, %v1114
          %v1130 = vadd.f32 %v1129, %v1115
          %v1131 = vadd.f32 %v1130, %v1116
          %1132 = vadd.xlane.f32.xlu0 %v1131
          %v1133 = vpop.xlane.xlu0 %1132
          %v1134 = vrot.slane %v1133, 4
          %v1135 = vadd.f32 %v1133, %v1134
          %v1136 = vrot.slane %v1135, 2
          %v1137 = vadd.f32 %v1135, %v1136
          %v1138 = vrot.slane %v1137, 1
          %v1139 = vadd.f32 %v1137, %v1138
          %s1140 = vtos %v1139
          %v1141 = vstv %s1140
          %v1142 = vadd.f32 %v1100, %v1141
          %1143 = vst [vmem:[%s422 + $0x1] sm:$0x1] %v1142
        $region93: #{ffgnn_forward.1} parent=72 // pred_fallthru
          _
        %p1144 = scmp.lt.s32.totalorder %s22, 2
        %s1145 = scalar_select %p1144, %s22, 2
        %s1146 = smul.addr %s1145, 16
        %s1147 = smul.addr %s1146, 8
        %s1148 = scalar_lea.vmem %s4, %s1147
        %p1149 = scmp.lt.s32.totalorder %s22, 2
        %s1150 = scalar_select %p1149, %s22, 2
        %s1151 = smul.addr %s1150, 8
        %s1152 = scalar_lea.vmem %s5, %s1151
        // Predicated region
        $region94: #{ffgnn_forward.1} parent=72 // pred_check
          %p1153 = pneg %p160
        $region95: #{ffgnn_forward.1} parent=72 // pred_check_branch
          %1155 = sbr.rel (%p1153) target = $region97
        $region96: #{ffgnn_forward.1} parent=72 // pred_region
          _
        $region97: #{ffgnn_forward.1} parent=72 // pred_fallthru
          _
        // Predicated region
        $region98: #{ffgnn_forward.1} parent=72 // pred_check
          %p1156 = pneg %p186
        $region99: #{ffgnn_forward.1} parent=72 // pred_check_branch
          %1158 = sbr.rel (%p1156) target = $region101
        $region100: #{ffgnn_forward.1} parent=72 // pred_region
          _
        $region101: #{ffgnn_forward.1} parent=72 // pred_fallthru
          _
      $region73: #{ffgnn_forward.1} parent=5 // pred_fallthru
        _
      %p1159 = scmp.le.s32.totalorder 2, %s12
      // Predicated region
      $region102: #{ffgnn_forward.1} parent=5 // pred_check
        %p1160 = pneg %p1159
      $region103: #{ffgnn_forward.1} parent=5 // pred_check_branch
        %1162 = sbr.rel (%p1160) target = $region105
      $region104: #{ffgnn_forward.1} parent=5 // pred_region
        %s1163 = ssub.s32 %s12, 2
        // Predicated region
        $region106: #{ffgnn_forward.1} parent=104 // pred_check
          %p1164 = pneg %p166
        $region107: #{ffgnn_forward.1} parent=104 // pred_check_branch
          %1166 = sbr.rel (%p1164) target = $region109
        $region108: #{ffgnn_forward.1} parent=104 // pred_region
          %p1167 = scmp.lt.s32.totalorder %s25, 2
          %s1168 = scalar_select %p1167, %s25, 2
          %s1169 = smul.addr %s1168, 16
          %s1170 = smul.addr %s1169, 8
          %s1171 = scalar_lea.vmem %s4, %s1170
        $region109: #{ffgnn_forward.1} parent=104 // pred_fallthru
          _
        // Predicated region
        $region110: #{ffgnn_forward.1} parent=104 // pred_check
          %p1172 = pneg %p192
        $region111: #{ffgnn_forward.1} parent=104 // pred_check_branch
          %1174 = sbr.rel (%p1172) target = $region113
        $region112: #{ffgnn_forward.1} parent=104 // pred_region
          %p1175 = scmp.lt.s32.totalorder %s25, 2
          %s1176 = scalar_select %p1175, %s25, 2
          %s1177 = smul.addr %s1176, 8
          %s1178 = scalar_lea.vmem %s5, %s1177
        $region113: #{ffgnn_forward.1} parent=104 // pred_fallthru
          _
      $region105: #{ffgnn_forward.1} parent=5 // pred_fallthru
        _
    $region6: #{ffgnn_forward.1} parent=1 // loop_footer
      %s16 = sadd.s32 1, %s12
    $region7: #{ffgnn_forward.1} parent=1 // loop_footer_branch
      %11 = sbr.rel target = $region3
    $region8: #{ffgnn_forward.1} parent=1 // loop_exit
      _

</llo_original>
